<compile_context>
chip_gen: v6e
topology: v6e:2x2x1
jax: 0.10.0
libtpu: 0.0.40
codegen_flags: <defaults>
</compile_context>

<pallas_src>
import jax
import jax.numpy as jnp
from jax.experimental import pallas as pl
from jax.experimental.pallas import tpu as pltpu

BN_EPS = 1e-5


# --------------------------------------------------------------------------
# helpers
# --------------------------------------------------------------------------

def _round_up(n, m):
    return ((n + m - 1) // m) * m


def _choose_tile(n, max_tile=512):
    # Big tiles (mem-bound regime), >=2 grid steps when cheap (v7x megacore),
    # multiples of 16 so bf16 blocks are tile-aligned.
    n8 = _round_up(max(int(n), 1), 8)
    t = min(max_tile, n8)
    if t == n8 and n8 >= 32:
        t = _round_up(n8 // 2, 16)
    return t


def _pad_rows(x, axis, n_pad):
    n = x.shape[axis]
    if n == n_pad:
        return x
    pads = [(0, 0)] * x.ndim
    pads[axis] = (0, n_pad - n)
    return jnp.pad(x, pads)


def _full(shape):
    zeros = (0,) * len(shape)
    return pl.BlockSpec(shape, lambda i, z=zeros: z)


# --------------------------------------------------------------------------
# Pallas kernels
# --------------------------------------------------------------------------

def _layer_kernel(x_ref, wsa_ref, gbsa_ref,
                  w1_ref, gb1_ref, w2_ref, gb2_ref,
                  gbpost_ref, wpost_ref,
                  f_ref, out_ref):
    # Fused per-layer chain: SetAbstraction -> InvResMLP blocks -> post_proj.
    K, tn, cin = x_ref.shape
    cout = wsa_ref.shape[1]
    nb = w1_ref.shape[0]

    # --- SetAbstraction: one (K*tn, cin+3) x (cin+3, cout) matmul, per-neighbor
    #     folded-BN affine + ReLU, then max over the K neighbors. ---
    x2 = x_ref[...].reshape(K * tn, cin)
    h = jnp.dot(x2, wsa_ref[...], preferred_element_type=jnp.float32)
    h = jnp.maximum(h * gbsa_ref[0:1, :] + gbsa_ref[1:2, :], 0.0)
    h3 = h.reshape(K, tn, cout)
    f = h3[0]
    for k in range(1, K):                       # K small & static -> unrolled
        f = jnp.maximum(f, h3[k])

    # --- InvResMLP blocks (pointwise); activations stay resident in VMEM. ---
    for b in range(nb):
        gb1 = gb1_ref[b]
        gb2 = gb2_ref[b]
        h1 = jnp.dot(f.astype(jnp.bfloat16), w1_ref[b],
                     preferred_element_type=jnp.float32)
        h1 = jnp.maximum(h1 * gb1[0:1, :] + gb1[1:2, :], 0.0)
        h2 = jnp.dot(h1.astype(jnp.bfloat16), w2_ref[b],
                     preferred_element_type=jnp.float32)
        f = f + h2 * gb2[0:1, :] + gb2[1:2, :]

    f_ref[...] = f.astype(f_ref.dtype)

    # --- post_proj: folded BN -> Linear(no bias). ---
    y = (f * gbpost_ref[0:1, :] + gbpost_ref[1:2, :]).astype(jnp.bfloat16)
    out_ref[...] = jnp.dot(y, wpost_ref[...], preferred_element_type=jnp.float32)


def _downsample_kernel(f_ref, fg_ref, wskip_ref, gbskip_ref,
                       wla_ref, gbla_ref, o_ref):
    # Fused: skip_proj (Linear->BN) + LocalAggregation (Linear->BN per neighbor,
    # max over K) + elementwise add, all under one row tile.
    K, tn, cin = fg_ref.shape
    cout = wskip_ref.shape[1]

    s = jnp.dot(f_ref[...], wskip_ref[...], preferred_element_type=jnp.float32)
    s = s * gbskip_ref[0:1, :] + gbskip_ref[1:2, :]

    h = jnp.dot(fg_ref[...].reshape(K * tn, cin), wla_ref[...],
                preferred_element_type=jnp.float32)
    h = h * gbla_ref[0:1, :] + gbla_ref[1:2, :]
    h3 = h.reshape(K, tn, cout)
    a = h3[0]
    for k in range(1, K):
        a = jnp.maximum(a, h3[k])

    o_ref[...] = (s + a).astype(o_ref.dtype)


# --------------------------------------------------------------------------
# Wrappers (pallas_call plumbing)
# --------------------------------------------------------------------------

def fused_layer(x_knc, wsa, gbsa, w1s, gb1s, w2s, gb2s, gbpost, wpost):
    K, n, cin = x_knc.shape
    cout = wsa.shape[1]
    head = wpost.shape[1]
    tn = _choose_tile(n)
    n_pad = _round_up(n, tn)
    x = _pad_rows(x_knc, 1, n_pad)
    f, f_out = pl.pallas_call(
        _layer_kernel,
        out_shape=(jax.ShapeDtypeStruct((n_pad, cout), jnp.bfloat16),
                   jax.ShapeDtypeStruct((n_pad, head), jnp.float32)),
        grid=(n_pad // tn,),
        in_specs=[pl.BlockSpec((K, tn, cin), lambda i: (0, i, 0)),
                  _full(wsa.shape), _full(gbsa.shape),
                  _full(w1s.shape), _full(gb1s.shape),
                  _full(w2s.shape), _full(gb2s.shape),
                  _full(gbpost.shape), _full(wpost.shape)],
        out_specs=(pl.BlockSpec((tn, cout), lambda i: (i, 0)),
                   pl.BlockSpec((tn, head), lambda i: (i, 0))),
        compiler_params=pltpu.CompilerParams(
            dimension_semantics=("parallel",)),
    )(x, wsa, gbsa, w1s, gb1s, w2s, gb2s, gbpost, wpost)
    return f[:n], f_out[:n]


def fused_downsample(f_rows, fg_knc, wskip, gbskip, wla, gbla):
    n, cin = f_rows.shape
    K = fg_knc.shape[0]
    cout = wskip.shape[1]
    tn = _choose_tile(n)
    n_pad = _round_up(n, tn)
    f_p = _pad_rows(f_rows, 0, n_pad)
    fg_p = _pad_rows(fg_knc, 1, n_pad)
    out = pl.pallas_call(
        _downsample_kernel,
        out_shape=jax.ShapeDtypeStruct((n_pad, cout), jnp.bfloat16),
        grid=(n_pad // tn,),
        in_specs=[pl.BlockSpec((tn, cin), lambda i: (i, 0)),
                  pl.BlockSpec((K, tn, cin), lambda i: (0, i, 0)),
                  _full(wskip.shape), _full(gbskip.shape),
                  _full(wla.shape), _full(gbla.shape)],
        out_specs=pl.BlockSpec((tn, cout), lambda i: (i, 0)),
        compiler_params=pltpu.CompilerParams(
            dimension_semantics=("parallel",)),
    )(f_p, fg_p, wskip, gbskip, wla, gbla)
    return out[:n]


# --------------------------------------------------------------------------
# Backbone configuration, deterministic parameters, synthetic index tables
# --------------------------------------------------------------------------

class Cfg:
    in_channels = 4
    channel_list = (32, 64)        # small stand-in for [64, 128, 256, 512]
    head_channels = 32
    mlp_ratio = 2.0
    res_blocks = (2, 2)
    mamba_blocks = (0, 0)          # mamba disabled -> PointMambaLayer skipped
    diff_factor = 40.0
    K = 8                          # neighbors per group
    task_type = "segsem"


def _linear_w(key, cin, cout):
    return jax.random.normal(key, (cin, cout), jnp.float32) / jnp.sqrt(float(cin))


def _gb(weight_val, c):
    # BatchNorm1d folded for eval: running_mean=0, running_var=1, bias=0.
    gamma = jnp.full((c,), float(weight_val), jnp.float32) / jnp.sqrt(1.0 + BN_EPS)
    beta = jnp.zeros((c,), jnp.float32)
    return jnp.stack([gamma, beta])          # (2, c)


def make_params(key, cfg):
    keys = iter(jax.random.split(key, 128))
    nxt = lambda: next(keys)
    params = []
    for l, cout in enumerate(cfg.channel_list):
        cin = cfg.in_channels if l == 0 else cfg.channel_list[l - 1]
        P = {}
        if l > 0:
            P["skip_w"] = _linear_w(nxt(), cin, cout).astype(jnp.bfloat16)
            P["skip_gb"] = _gb(0.3, cout)          # init.constant_(..., 0.3)
            P["la_w"] = _linear_w(nxt(), cin, cout).astype(jnp.bfloat16)
            P["la_gb"] = _gb(1.0, cout)
        sa_cin = cin if l == 0 else cout
        wf = _linear_w(nxt(), sa_cin, cout)
        wp = _linear_w(nxt(), 3, cout)
        P["sa_w"] = jnp.concatenate([wf, wp], axis=0).astype(jnp.bfloat16)  # (sa_cin+3, cout)
        P["sa_gb"] = _gb(1.0, cout)
        hidden = int(cout * cfg.mlp_ratio)
        w1s, gb1s, w2s, gb2s = [], [], [], []
        for _ in range(cfg.res_blocks[l]):
            w1s.append(_linear_w(nxt(), cout, hidden))
            gb1s.append(_gb(1.0, hidden))
            w2s.append(_linear_w(nxt(), hidden, cout))
            gb2s.append(_gb(1.0, cout))
        P["res_w1"] = jnp.stack(w1s).astype(jnp.bfloat16)   # (nb, cout, hidden)
        P["res_gb1"] = jnp.stack(gb1s)                      # (nb, 2, hidden)
        P["res_w2"] = jnp.stack(w2s).astype(jnp.bfloat16)   # (nb, hidden, cout)
        P["res_gb2"] = jnp.stack(gb2s)                      # (nb, 2, cout)
        P["post_gb"] = _gb((cfg.channel_list[0] / cout) ** 0.5, cout)
        P["post_w"] = _linear_w(nxt(), cout, cfg.head_channels).astype(jnp.bfloat16)
        params.append(P)
    return params


def make_indices(key, cfg, n0):
    # Synthetic stand-ins for gs.gs_points.{idx_group, idx_ds, idx_us}
    L = len(cfg.channel_list)
    ns = [n0 // (2 ** l) for l in range(L)]
    kg, kd, ku = jax.random.split(key, 3)
    gkeys = jax.random.split(kg, L)
    dkeys = jax.random.split(kd, L)
    ukeys = jax.random.split(ku, L)
    idx_group = [jax.random.randint(gkeys[l], (ns[l], cfg.K), 0, ns[l]) for l in range(L)]
    idx_ds = [jax.random.randint(dkeys[l], (ns[l + 1],), 0, ns[l]) for l in range(L - 1)]
    idx_us = [jax.random.randint(ukeys[l], (ns[l],), 0, ns[l + 1]) for l in range(L - 1)]
    return dict(idx_group=idx_group, idx_ds=idx_ds, idx_us=idx_us, n_list=ns)


# --------------------------------------------------------------------------
# Backbone forward (recursive, eval mode)
# --------------------------------------------------------------------------

def backbone_forward(layer_index, p, f, f_gs, params, indices, cfg):
    L = len(cfg.channel_list)
    is_head = layer_index == 0
    is_tail = layer_index == L - 1
    P = params[layer_index]

    if is_head:
        p = p * cfg.diff_factor                       # p.mul_(diff_factor)
        f = f.astype(jnp.bfloat16)
    else:
        idx = indices["idx_ds"][layer_index - 1]
        # skip_proj / LocalAggregation are row-wise in eval mode, so compute
        # them only for the downsampled rows (identical result, half the work).
        pre_gi = indices["idx_group"][layer_index - 1][idx]      # (N_ds, K)
        f_ds = f[idx]                                            # (N_ds, C_prev)
        fg = f[pre_gi.T]                                         # (K, N_ds, C_prev)
        f = fused_downsample(f_ds, fg, P["skip_w"], P["skip_gb"],
                             P["la_w"], P["la_gb"])
        p = p[idx]
        f_gs = f_gs[idx]

    group_idx = indices["idx_group"][layer_index]                # (N, K)

    # Neighbor gather (JAX glue); channel-concat features with relative xyz so
    # the kernel does one fused (cin+3)-wide matmul per tile.
    # TODO(synk): move this gather in-kernel via PrefetchScalarGridSpec.
    fg = f[group_idx.T]                                          # (K, N, C)
    p_rel = (p[group_idx.T] - p[None, :, :]).astype(jnp.bfloat16)  # (K, N, 3)
    x = jnp.concatenate([fg, p_rel], axis=-1)                    # (K, N, C+3)

    # Fused: SetAbstraction -> InvResMLP blocks -> post_proj (one pallas_call).
    # TODO(synk): per-block neighbor aggregation inside InvResMLP (uses
    # group_idx) and the PointMambaLayer (mamba_blocks=0) branch are not
    # reproduced.
    f, f_out = fused_layer(x, P["sa_w"], P["sa_gb"],
                           P["res_w1"], P["res_gb1"],
                           P["res_w2"], P["res_gb2"],
                           P["post_gb"], P["post_w"])

    if not is_tail:
        f_sub, _ = backbone_forward(layer_index + 1, p, f, f_gs, params, indices, cfg)
    else:
        f_sub = None

    if not is_head:
        f_out = f_out[indices["idx_us"][layer_index - 1]]
    # head_drop (DropPath): identity at inference
    f_out = f_sub + f_out if f_sub is not None else f_out

    diff = 0.0                                         # use_diff=False / eval
    return f_out, diff


# --------------------------------------------------------------------------

if __name__ == "__main__":
    cfg = Cfg()
    key = jax.random.PRNGKey(0)
    kp, kf, kg, kparam, kidx = jax.random.split(key, 5)

    N0 = 64
    p = jax.random.normal(kp, (N0, 3), jnp.float32)                    # xyz
    f = jax.random.normal(kf, (N0, cfg.in_channels), jnp.float32)      # features
    f_gs = jax.random.normal(kg, (N0, 16), jnp.float32)                # unused (mamba off)

    params = make_params(kparam, cfg)
    indices = make_indices(kidx, cfg, N0)

    f_out, diff = backbone_forward(0, p, f, f_gs, params, indices, cfg)
    f_out = jax.block_until_ready(f_out)

    assert f_out.shape == (N0, cfg.head_channels), f_out.shape
    assert jnp.all(jnp.isfinite(f_out))
    print("KERNEL_OK")
</pallas_src>

<mosaic_0001>
module attributes {stable_mosaic.version = 11 : i64} {
  func.func @_layer_kernel(%arg0: i32, %arg1: memref<8x32x7xbf16, #tpu.memory_space<vmem>>, %arg2: memref<7x32xbf16, #tpu.memory_space<vmem>>, %arg3: memref<2x32xf32, #tpu.memory_space<vmem>>, %arg4: memref<2x32x64xbf16, #tpu.memory_space<vmem>>, %arg5: memref<2x2x64xf32, #tpu.memory_space<vmem>>, %arg6: memref<2x64x32xbf16, #tpu.memory_space<vmem>>, %arg7: memref<2x2x32xf32, #tpu.memory_space<vmem>>, %arg8: memref<2x32xf32, #tpu.memory_space<vmem>>, %arg9: memref<32x32xbf16, #tpu.memory_space<vmem>>, %arg10: memref<32x32xbf16, #tpu.memory_space<vmem>>, %arg11: memref<32x32xf32, #tpu.memory_space<vmem>>) attributes {dimension_semantics = [#tpu.dimension_semantics<parallel>], iteration_bounds = array<i64: 2>, scalar_prefetch = 0 : i64, scratch_operands = 0 : i64, tpu.core_type = #tpu.core_type<tc>, window_params = [{transform_indices = @transform_0, window_bounds = array<i64: 8, 32, 7>}, {pipeline_mode = #tpu.pipeline_mode<synchronous>, transform_indices = @transform_1, window_bounds = array<i64: 7, 32>}, {pipeline_mode = #tpu.pipeline_mode<synchronous>, transform_indices = @transform_2, window_bounds = array<i64: 2, 32>}, {pipeline_mode = #tpu.pipeline_mode<synchronous>, transform_indices = @transform_3, window_bounds = array<i64: 2, 32, 64>}, {pipeline_mode = #tpu.pipeline_mode<synchronous>, transform_indices = @transform_4, window_bounds = array<i64: 2, 2, 64>}, {pipeline_mode = #tpu.pipeline_mode<synchronous>, transform_indices = @transform_5, window_bounds = array<i64: 2, 64, 32>}, {pipeline_mode = #tpu.pipeline_mode<synchronous>, transform_indices = @transform_6, window_bounds = array<i64: 2, 2, 32>}, {pipeline_mode = #tpu.pipeline_mode<synchronous>, transform_indices = @transform_7, window_bounds = array<i64: 2, 32>}, {pipeline_mode = #tpu.pipeline_mode<synchronous>, transform_indices = @transform_8, window_bounds = array<i64: 32, 32>}, {transform_indices = @transform_9, window_bounds = array<i64: 32, 32>}, {transform_indices = @transform_10, window_bounds = array<i64: 32, 32>}]} {
    %c0 = arith.constant 0 : index
    %c0_0 = arith.constant 0 : index
    %c0_1 = arith.constant 0 : index
    %0 = vector.load %arg1[%c0, %c0_0, %c0_1] : memref<8x32x7xbf16, #tpu.memory_space<vmem>>, vector<8x32x7xbf16>
    %1 = vector.shape_cast %0 : vector<8x32x7xbf16> to vector<256x7xbf16>
    %c0_2 = arith.constant 0 : index
    %c0_3 = arith.constant 0 : index
    %2 = vector.load %arg2[%c0_2, %c0_3] : memref<7x32xbf16, #tpu.memory_space<vmem>>, vector<7x32xbf16>
    %cst = arith.constant dense<0.000000e+00> : vector<256x32xf32>
    %3 = tpu.matmul %1, %2, %cst {dimension_numbers = #tpu.dot_dimension_numbers<[1], [0], [0], [1], [0, 0, 1, 1], [], []>} : vector<256x7xbf16>, vector<7x32xbf16>, vector<256x32xf32> -> vector<256x32xf32>
    %c0_4 = arith.constant 0 : index
    %c0_5 = arith.constant 0 : index
    %4 = vector.load %arg3[%c0_4, %c0_5] : memref<2x32xf32, #tpu.memory_space<vmem>>, vector<1x32xf32>
    %5 = vector.broadcast %4 : vector<1x32xf32> to vector<256x32xf32>
    %6 = arith.mulf %3, %5 : vector<256x32xf32>
    %c1 = arith.constant 1 : index
    %c0_6 = arith.constant 0 : index
    %7 = vector.load %arg3[%c1, %c0_6] : memref<2x32xf32, #tpu.memory_space<vmem>>, vector<1x32xf32>
    %8 = vector.broadcast %7 : vector<1x32xf32> to vector<256x32xf32>
    %9 = arith.addf %6, %8 : vector<256x32xf32>
    %cst_7 = arith.constant 0.000000e+00 : f32
    %10 = vector.broadcast %cst_7 : f32 to vector<256x32xf32>
    %11 = arith.maximumf %9, %10 : vector<256x32xf32>
    %12 = vector.shape_cast %11 : vector<256x32xf32> to vector<8x32x32xf32>
    %13 = vector.extract_strided_slice %12 {offsets = [0, 0, 0], sizes = [1, 32, 32], strides = [1, 1, 1]} : vector<8x32x32xf32> to vector<1x32x32xf32>
    %14 = vector.shape_cast %13 : vector<1x32x32xf32> to vector<32x32xf32>
    %15 = vector.extract_strided_slice %12 {offsets = [1, 0, 0], sizes = [1, 32, 32], strides = [1, 1, 1]} : vector<8x32x32xf32> to vector<1x32x32xf32>
    %16 = vector.shape_cast %15 : vector<1x32x32xf32> to vector<32x32xf32>
    %17 = arith.maximumf %14, %16 : vector<32x32xf32>
    %18 = vector.extract_strided_slice %12 {offsets = [2, 0, 0], sizes = [1, 32, 32], strides = [1, 1, 1]} : vector<8x32x32xf32> to vector<1x32x32xf32>
    %19 = vector.shape_cast %18 : vector<1x32x32xf32> to vector<32x32xf32>
    %20 = arith.maximumf %17, %19 : vector<32x32xf32>
    %21 = vector.extract_strided_slice %12 {offsets = [3, 0, 0], sizes = [1, 32, 32], strides = [1, 1, 1]} : vector<8x32x32xf32> to vector<1x32x32xf32>
    %22 = vector.shape_cast %21 : vector<1x32x32xf32> to vector<32x32xf32>
    %23 = arith.maximumf %20, %22 : vector<32x32xf32>
    %24 = vector.extract_strided_slice %12 {offsets = [4, 0, 0], sizes = [1, 32, 32], strides = [1, 1, 1]} : vector<8x32x32xf32> to vector<1x32x32xf32>
    %25 = vector.shape_cast %24 : vector<1x32x32xf32> to vector<32x32xf32>
    %26 = arith.maximumf %23, %25 : vector<32x32xf32>
    %27 = vector.extract_strided_slice %12 {offsets = [5, 0, 0], sizes = [1, 32, 32], strides = [1, 1, 1]} : vector<8x32x32xf32> to vector<1x32x32xf32>
    %28 = vector.shape_cast %27 : vector<1x32x32xf32> to vector<32x32xf32>
    %29 = arith.maximumf %26, %28 : vector<32x32xf32>
    %30 = vector.extract_strided_slice %12 {offsets = [6, 0, 0], sizes = [1, 32, 32], strides = [1, 1, 1]} : vector<8x32x32xf32> to vector<1x32x32xf32>
    %31 = vector.shape_cast %30 : vector<1x32x32xf32> to vector<32x32xf32>
    %32 = arith.maximumf %29, %31 : vector<32x32xf32>
    %33 = vector.extract_strided_slice %12 {offsets = [7, 0, 0], sizes = [1, 32, 32], strides = [1, 1, 1]} : vector<8x32x32xf32> to vector<1x32x32xf32>
    %34 = vector.shape_cast %33 : vector<1x32x32xf32> to vector<32x32xf32>
    %35 = arith.maximumf %32, %34 : vector<32x32xf32>
    %c0_8 = arith.constant 0 : index
    %c0_9 = arith.constant 0 : index
    %c0_10 = arith.constant 0 : index
    %36 = vector.load %arg5[%c0_8, %c0_9, %c0_10] : memref<2x2x64xf32, #tpu.memory_space<vmem>>, vector<1x2x64xf32>
    %37 = vector.shape_cast %36 : vector<1x2x64xf32> to vector<2x64xf32>
    %c0_11 = arith.constant 0 : index
    %c0_12 = arith.constant 0 : index
    %c0_13 = arith.constant 0 : index
    %38 = vector.load %arg7[%c0_11, %c0_12, %c0_13] : memref<2x2x32xf32, #tpu.memory_space<vmem>>, vector<1x2x32xf32>
    %39 = vector.shape_cast %38 : vector<1x2x32xf32> to vector<2x32xf32>
    %40 = arith.truncf %35 : vector<32x32xf32> to vector<32x32xbf16>
    %c0_14 = arith.constant 0 : index
    %c0_15 = arith.constant 0 : index
    %c0_16 = arith.constant 0 : index
    %41 = vector.load %arg4[%c0_14, %c0_15, %c0_16] : memref<2x32x64xbf16, #tpu.memory_space<vmem>>, vector<1x32x64xbf16>
    %42 = vector.shape_cast %41 : vector<1x32x64xbf16> to vector<32x64xbf16>
    %cst_17 = arith.constant dense<0.000000e+00> : vector<32x64xf32>
    %43 = tpu.matmul %40, %42, %cst_17 {dimension_numbers = #tpu.dot_dimension_numbers<[1], [0], [0], [1], [0, 0, 1, 1], [], []>} : vector<32x32xbf16>, vector<32x64xbf16>, vector<32x64xf32> -> vector<32x64xf32>
    %44 = vector.extract_strided_slice %37 {offsets = [0, 0], sizes = [1, 64], strides = [1, 1]} : vector<2x64xf32> to vector<1x64xf32>
    %45 = vector.broadcast %44 : vector<1x64xf32> to vector<32x64xf32>
    %46 = arith.mulf %43, %45 : vector<32x64xf32>
    %47 = vector.extract_strided_slice %37 {offsets = [1, 0], sizes = [1, 64], strides = [1, 1]} : vector<2x64xf32> to vector<1x64xf32>
    %48 = vector.broadcast %47 : vector<1x64xf32> to vector<32x64xf32>
    %49 = arith.addf %46, %48 : vector<32x64xf32>
    %cst_18 = arith.constant 0.000000e+00 : f32
    %50 = vector.broadcast %cst_18 : f32 to vector<32x64xf32>
    %51 = arith.maximumf %49, %50 : vector<32x64xf32>
    %52 = arith.truncf %51 : vector<32x64xf32> to vector<32x64xbf16>
    %c0_19 = arith.constant 0 : index
    %c0_20 = arith.constant 0 : index
    %c0_21 = arith.constant 0 : index
    %53 = vector.load %arg6[%c0_19, %c0_20, %c0_21] : memref<2x64x32xbf16, #tpu.memory_space<vmem>>, vector<1x64x32xbf16>
    %54 = vector.shape_cast %53 : vector<1x64x32xbf16> to vector<64x32xbf16>
    %cst_22 = arith.constant dense<0.000000e+00> : vector<32x32xf32>
    %55 = tpu.matmul %52, %54, %cst_22 {dimension_numbers = #tpu.dot_dimension_numbers<[1], [0], [0], [1], [0, 0, 1, 1], [], []>} : vector<32x64xbf16>, vector<64x32xbf16>, vector<32x32xf32> -> vector<32x32xf32>
    %56 = vector.extract_strided_slice %39 {offsets = [0, 0], sizes = [1, 32], strides = [1, 1]} : vector<2x32xf32> to vector<1x32xf32>
    %57 = vector.broadcast %56 : vector<1x32xf32> to vector<32x32xf32>
    %58 = arith.mulf %55, %57 : vector<32x32xf32>
    %59 = arith.addf %35, %58 : vector<32x32xf32>
    %60 = vector.extract_strided_slice %39 {offsets = [1, 0], sizes = [1, 32], strides = [1, 1]} : vector<2x32xf32> to vector<1x32xf32>
    %61 = vector.broadcast %60 : vector<1x32xf32> to vector<32x32xf32>
    %62 = arith.addf %59, %61 : vector<32x32xf32>
    %c1_23 = arith.constant 1 : index
    %c0_24 = arith.constant 0 : index
    %c0_25 = arith.constant 0 : index
    %63 = vector.load %arg5[%c1_23, %c0_24, %c0_25] : memref<2x2x64xf32, #tpu.memory_space<vmem>>, vector<1x2x64xf32>
    %64 = vector.shape_cast %63 : vector<1x2x64xf32> to vector<2x64xf32>
    %c1_26 = arith.constant 1 : index
    %c0_27 = arith.constant 0 : index
    %c0_28 = arith.constant 0 : index
    %65 = vector.load %arg7[%c1_26, %c0_27, %c0_28] : memref<2x2x32xf32, #tpu.memory_space<vmem>>, vector<1x2x32xf32>
    %66 = vector.shape_cast %65 : vector<1x2x32xf32> to vector<2x32xf32>
    %67 = arith.truncf %62 : vector<32x32xf32> to vector<32x32xbf16>
    %c1_29 = arith.constant 1 : index
    %c0_30 = arith.constant 0 : index
    %c0_31 = arith.constant 0 : index
    %68 = vector.load %arg4[%c1_29, %c0_30, %c0_31] : memref<2x32x64xbf16, #tpu.memory_space<vmem>>, vector<1x32x64xbf16>
    %69 = vector.shape_cast %68 : vector<1x32x64xbf16> to vector<32x64xbf16>
    %cst_32 = arith.constant dense<0.000000e+00> : vector<32x64xf32>
    %70 = tpu.matmul %67, %69, %cst_32 {dimension_numbers = #tpu.dot_dimension_numbers<[1], [0], [0], [1], [0, 0, 1, 1], [], []>} : vector<32x32xbf16>, vector<32x64xbf16>, vector<32x64xf32> -> vector<32x64xf32>
    %71 = vector.extract_strided_slice %64 {offsets = [0, 0], sizes = [1, 64], strides = [1, 1]} : vector<2x64xf32> to vector<1x64xf32>
    %72 = vector.broadcast %71 : vector<1x64xf32> to vector<32x64xf32>
    %73 = arith.mulf %70, %72 : vector<32x64xf32>
    %74 = vector.extract_strided_slice %64 {offsets = [1, 0], sizes = [1, 64], strides = [1, 1]} : vector<2x64xf32> to vector<1x64xf32>
    %75 = vector.broadcast %74 : vector<1x64xf32> to vector<32x64xf32>
    %76 = arith.addf %73, %75 : vector<32x64xf32>
    %cst_33 = arith.constant 0.000000e+00 : f32
    %77 = vector.broadcast %cst_33 : f32 to vector<32x64xf32>
    %78 = arith.maximumf %76, %77 : vector<32x64xf32>
    %79 = arith.truncf %78 : vector<32x64xf32> to vector<32x64xbf16>
    %c1_34 = arith.constant 1 : index
    %c0_35 = arith.constant 0 : index
    %c0_36 = arith.constant 0 : index
    %80 = vector.load %arg6[%c1_34, %c0_35, %c0_36] : memref<2x64x32xbf16, #tpu.memory_space<vmem>>, vector<1x64x32xbf16>
    %81 = vector.shape_cast %80 : vector<1x64x32xbf16> to vector<64x32xbf16>
    %cst_37 = arith.constant dense<0.000000e+00> : vector<32x32xf32>
    %82 = tpu.matmul %79, %81, %cst_37 {dimension_numbers = #tpu.dot_dimension_numbers<[1], [0], [0], [1], [0, 0, 1, 1], [], []>} : vector<32x64xbf16>, vector<64x32xbf16>, vector<32x32xf32> -> vector<32x32xf32>
    %83 = vector.extract_strided_slice %66 {offsets = [0, 0], sizes = [1, 32], strides = [1, 1]} : vector<2x32xf32> to vector<1x32xf32>
    %84 = vector.broadcast %83 : vector<1x32xf32> to vector<32x32xf32>
    %85 = arith.mulf %82, %84 : vector<32x32xf32>
    %86 = arith.addf %62, %85 : vector<32x32xf32>
    %87 = vector.extract_strided_slice %66 {offsets = [1, 0], sizes = [1, 32], strides = [1, 1]} : vector<2x32xf32> to vector<1x32xf32>
    %88 = vector.broadcast %87 : vector<1x32xf32> to vector<32x32xf32>
    %89 = arith.addf %86, %88 : vector<32x32xf32>
    %90 = arith.truncf %89 : vector<32x32xf32> to vector<32x32xbf16>
    %c0_38 = arith.constant 0 : index
    %c0_39 = arith.constant 0 : index
    %91 = vector.load %arg10[%c0_38, %c0_39] : memref<32x32xbf16, #tpu.memory_space<vmem>>, vector<32x32xbf16>
    tpu.vector_store %arg10[%c0_38, %c0_39], %90 {strides = array<i32>} : memref<32x32xbf16, #tpu.memory_space<vmem>>, vector<32x32xbf16>,
    %c0_40 = arith.constant 0 : index
    %c0_41 = arith.constant 0 : index
    %92 = vector.load %arg8[%c0_40, %c0_41] : memref<2x32xf32, #tpu.memory_space<vmem>>, vector<1x32xf32>
    %93 = vector.broadcast %92 : vector<1x32xf32> to vector<32x32xf32>
    %94 = arith.mulf %89, %93 : vector<32x32xf32>
    %c1_42 = arith.constant 1 : index
    %c0_43 = arith.constant 0 : index
    %95 = vector.load %arg8[%c1_42, %c0_43] : memref<2x32xf32, #tpu.memory_space<vmem>>, vector<1x32xf32>
    %96 = vector.broadcast %95 : vector<1x32xf32> to vector<32x32xf32>
    %97 = arith.addf %94, %96 : vector<32x32xf32>
    %98 = arith.truncf %97 : vector<32x32xf32> to vector<32x32xbf16>
    %c0_44 = arith.constant 0 : index
    %c0_45 = arith.constant 0 : index
    %99 = vector.load %arg9[%c0_44, %c0_45] : memref<32x32xbf16, #tpu.memory_space<vmem>>, vector<32x32xbf16>
    %cst_46 = arith.constant dense<0.000000e+00> : vector<32x32xf32>
    %100 = tpu.matmul %98, %99, %cst_46 {dimension_numbers = #tpu.dot_dimension_numbers<[1], [0], [0], [1], [0, 0, 1, 1], [], []>} : vector<32x32xbf16>, vector<32x32xbf16>, vector<32x32xf32> -> vector<32x32xf32>
    %c0_47 = arith.constant 0 : index
    %c0_48 = arith.constant 0 : index
    %101 = vector.load %arg11[%c0_47, %c0_48] : memref<32x32xf32, #tpu.memory_space<vmem>>, vector<32x32xf32>
    tpu.vector_store %arg11[%c0_47, %c0_48], %100 {strides = array<i32>} : memref<32x32xf32, #tpu.memory_space<vmem>>, vector<32x32xf32>,
    return
  }
  func.func @transform_0(%arg0: i32) -> (i32, i32, i32) {
    %c0_i32 = arith.constant 0 : i32
    %c0_i32_0 = arith.constant 0 : i32
    %c0_i32_1 = arith.constant 0 : i32
    return %c0_i32, %arg0, %c0_i32_0 : i32, i32, i32
  }
  func.func @transform_1(%arg0: i32) -> (i32, i32) {
    %c0_i32 = arith.constant 0 : i32
    %c0_i32_0 = arith.constant 0 : i32
    %c0_i32_1 = arith.constant 0 : i32
    return %c0_i32, %c0_i32_0 : i32, i32
  }
  func.func @transform_2(%arg0: i32) -> (i32, i32) {
    %c0_i32 = arith.constant 0 : i32
    %c0_i32_0 = arith.constant 0 : i32
    %c0_i32_1 = arith.constant 0 : i32
    return %c0_i32, %c0_i32_0 : i32, i32
  }
  func.func @transform_3(%arg0: i32) -> (i32, i32, i32) {
    %c0_i32 = arith.constant 0 : i32
    %c0_i32_0 = arith.constant 0 : i32
    %c0_i32_1 = arith.constant 0 : i32
    %c0_i32_2 = arith.constant 0 : i32
    return %c0_i32, %c0_i32_0, %c0_i32_1 : i32, i32, i32
  }
  func.func @transform_4(%arg0: i32) -> (i32, i32, i32) {
    %c0_i32 = arith.constant 0 : i32
    %c0_i32_0 = arith.constant 0 : i32
    %c0_i32_1 = arith.constant 0 : i32
    %c0_i32_2 = arith.constant 0 : i32
    return %c0_i32, %c0_i32_0, %c0_i32_1 : i32, i32, i32
  }
  func.func @transform_5(%arg0: i32) -> (i32, i32, i32) {
    %c0_i32 = arith.constant 0 : i32
    %c0_i32_0 = arith.constant 0 : i32
    %c0_i32_1 = arith.constant 0 : i32
    %c0_i32_2 = arith.constant 0 : i32
    return %c0_i32, %c0_i32_0, %c0_i32_1 : i32, i32, i32
  }
  func.func @transform_6(%arg0: i32) -> (i32, i32, i32) {
    %c0_i32 = arith.constant 0 : i32
    %c0_i32_0 = arith.constant 0 : i32
    %c0_i32_1 = arith.constant 0 : i32
    %c0_i32_2 = arith.constant 0 : i32
    return %c0_i32, %c0_i32_0, %c0_i32_1 : i32, i32, i32
  }
  func.func @transform_7(%arg0: i32) -> (i32, i32) {
    %c0_i32 = arith.constant 0 : i32
    %c0_i32_0 = arith.constant 0 : i32
    %c0_i32_1 = arith.constant 0 : i32
    return %c0_i32, %c0_i32_0 : i32, i32
  }
  func.func @transform_8(%arg0: i32) -> (i32, i32) {
    %c0_i32 = arith.constant 0 : i32
    %c0_i32_0 = arith.constant 0 : i32
    %c0_i32_1 = arith.constant 0 : i32
    return %c0_i32, %c0_i32_0 : i32, i32
  }
  func.func @transform_9(%arg0: i32) -> (i32, i32) {
    %c0_i32 = arith.constant 0 : i32
    %c0_i32_0 = arith.constant 0 : i32
    return %arg0, %c0_i32 : i32, i32
  }
  func.func @transform_10(%arg0: i32) -> (i32, i32) {
    %c0_i32 = arith.constant 0 : i32
    %c0_i32_0 = arith.constant 0 : i32
    return %arg0, %c0_i32 : i32, i32
  }
}

</mosaic_0001>

<llo_original>
// kernel: tpu_custom_call.1
$region0: #{tpu_custom_call.1}
  #allocation0 [shape = 'u32[]', space=smem, size = 0x4, offset = 0x4, fixed_abs, tag = 'smem constant byte address 0x4 - core index']
  #allocation1 [shape = 'u32[144,128]{1,0:T(1,128)}', space=vmem, size = 0x12000, scoped, tag = 'internal scratch']
  %s0 = inlined_call_operand.vmem [shape: bf16[8,64,7], index: 0, kind: input, shape index: {}]
  %s1 = inlined_call_operand.vmem [shape: bf16[7,32], index: 1, kind: input, shape index: {}]
  %s2 = inlined_call_operand.vmem [shape: f32[2,32], index: 2, kind: input, shape index: {}]
  %s3 = inlined_call_operand.vmem [shape: bf16[2,32,64], index: 3, kind: input, shape index: {}]
  %s4 = inlined_call_operand.vmem [shape: f32[2,2,64], index: 4, kind: input, shape index: {}]
  %s5 = inlined_call_operand.vmem [shape: bf16[2,64,32], index: 5, kind: input, shape index: {}]
  %s6 = inlined_call_operand.vmem [shape: f32[2,2,32], index: 6, kind: input, shape index: {}]
  %s7 = inlined_call_operand.vmem [shape: f32[2,32], index: 7, kind: input, shape index: {}]
  %s8 = inlined_call_operand.vmem [shape: bf16[32,32], index: 8, kind: input, shape index: {}]
  %s9 = inlined_call_operand.vmem [shape: bf16[64,32], index: 9, kind: output, shape index: {0}]
  %s10 = inlined_call_operand.vmem [shape: f32[64,32], index: 10, kind: output, shape index: {1}]
  %11 = xla_tuple %s9, %s10
  %s12 = sld [smem:[#allocation0]]
  $region118: #{tpu_custom_call.1} parent=0
    _
  %s14 = ssub.s32 1, %s12
  %s15 = scalar_select 0, %s14, %s12
  $region1: #{tpu_custom_call.1} parent=0
    #allocation2 [shape = 'u8[131072]{0}', space=vmem, size = 0x20000, scoped, tag = 'input window, operand 0']
    loop: start=0, step=1, limit=4
    $region2: #{tpu_custom_call.1} parent=1 // loop_pre_header
      _
    $region3: #{tpu_custom_call.1} parent=1 // loop_header
      %s17 = sphi 0, %s21
      %p18 = scmp.ge.s32.totalorder %s17, 4
      %s27 = sphi 0, %s29
      %s30 = sphi 0, %s27
      %s31 = sphi 0, %s30
      %s47 = sphi 0, %s31
      %s51 = sphi 0, %s51
      %s53 = sphi 0, %s51
      %s54 = sphi 0, %s53
      %s68 = sphi 0, %s54
      %s72 = sphi 0, %s72
      %s74 = sphi 0, %s72
      %s75 = sphi 0, %s74
      %s89 = sphi 0, %s75
      %s93 = sphi 0, %s93
      %s95 = sphi 0, %s93
      %s96 = sphi 0, %s95
      %s110 = sphi 0, %s96
      %s114 = sphi 0, %s114
      %s116 = sphi 0, %s114
      %s117 = sphi 0, %s116
      %s131 = sphi 0, %s117
      %s135 = sphi 0, %s135
      %s137 = sphi 0, %s135
      %s138 = sphi 0, %s137
      %s152 = sphi 0, %s138
      %s156 = sphi 0, %s156
      %s158 = sphi 0, %s156
      %s159 = sphi 0, %s158
      %s173 = sphi 0, %s159
      %s177 = sphi 0, %s177
      %s179 = sphi 0, %s177
      %s180 = sphi 0, %s179
      %s194 = sphi 0, %s180
      %s198 = sphi 0, %s198
      %s200 = sphi 0, %s198
      %s201 = sphi 0, %s200
      %s215 = sphi 0, %s201
      %s221 = sphi 0, %s223
      %s224 = sphi 0, %s221
      %s225 = sphi 0, %s224
      %s241 = sphi 0, %s225
      %s247 = sphi 0, %s249
      %s250 = sphi 0, %s247
      %s251 = sphi 0, %s250
      %s267 = sphi 0, %s251
    $region4: #{tpu_custom_call.1} parent=1 // loop_header_branch
      %20 = sbr.rel (%p18) target = $region8
    $region5: #{tpu_custom_call.1} parent=1 // loop_body
      %s22 = ssub.s32 %s17, 1
      %s23 = ssub.s32 %s17, 2
      %s24 = sadd.s32 %s17, 1
      %s25 = ssub.s32 %s17, %s24
      %p26 = scmp.eq.s32.totalorder %s25, 0
      %s28 = sadd.s32 %s27, 1
      %s29 = scalar_select %p26, %s27, %s28
      %p32 = pneg %p26
      %p33 = scmp.eq.s32.totalorder %s17, 1
      %p34 = por %p32, %p33
      %p35 = scmp.ne.s32.totalorder %s27, %s30
      %p36 = scmp.eq.s32.totalorder %s17, 0
      %p37 = por %p35, %p36
      %p38 = scmp.ne.s32.totalorder %s27, %s30
      %p39 = scmp.eq.s32.totalorder %s22, 1
      %p40 = por %p38, %p39
      %p41 = scmp.ne.s32.totalorder %s30, %s31
      %p42 = scmp.eq.s32.totalorder %s22, 0
      %p43 = por %p41, %p42
      %p44 = scmp.ne.s32.totalorder %s30, %s31
      %p45 = scmp.eq.s32.totalorder %s23, 1
      %p46 = por %p44, %p45
      %p48 = scmp.ne.s32.totalorder %s31, %s47
      %p49 = scmp.eq.s32.totalorder %s23, 0
      %p50 = por %p48, %p49
      %s52 = sadd.s32 %s51, 1
      %p55 = scmp.eq.s32.totalorder %s17, 1
      %p56 = scmp.ne.s32.totalorder %s51, %s53
      %p57 = scmp.eq.s32.totalorder %s17, 0
      %p58 = por %p56, %p57
      %p59 = scmp.ne.s32.totalorder %s51, %s53
      %p60 = scmp.eq.s32.totalorder %s22, 1
      %p61 = por %p59, %p60
      %p62 = scmp.ne.s32.totalorder %s53, %s54
      %p63 = scmp.eq.s32.totalorder %s22, 0
      %p64 = por %p62, %p63
      %p65 = scmp.ne.s32.totalorder %s53, %s54
      %p66 = scmp.eq.s32.totalorder %s23, 1
      %p67 = por %p65, %p66
      %p69 = scmp.ne.s32.totalorder %s54, %s68
      %p70 = scmp.eq.s32.totalorder %s23, 0
      %p71 = por %p69, %p70
      %s73 = sadd.s32 %s72, 1
      %p76 = scmp.eq.s32.totalorder %s17, 1
      %p77 = scmp.ne.s32.totalorder %s72, %s74
      %p78 = scmp.eq.s32.totalorder %s17, 0
      %p79 = por %p77, %p78
      %p80 = scmp.ne.s32.totalorder %s72, %s74
      %p81 = scmp.eq.s32.totalorder %s22, 1
      %p82 = por %p80, %p81
      %p83 = scmp.ne.s32.totalorder %s74, %s75
      %p84 = scmp.eq.s32.totalorder %s22, 0
      %p85 = por %p83, %p84
      %p86 = scmp.ne.s32.totalorder %s74, %s75
      %p87 = scmp.eq.s32.totalorder %s23, 1
      %p88 = por %p86, %p87
      %p90 = scmp.ne.s32.totalorder %s75, %s89
      %p91 = scmp.eq.s32.totalorder %s23, 0
      %p92 = por %p90, %p91
      %s94 = sadd.s32 %s93, 1
      %p97 = scmp.eq.s32.totalorder %s17, 1
      %p98 = scmp.ne.s32.totalorder %s93, %s95
      %p99 = scmp.eq.s32.totalorder %s17, 0
      %p100 = por %p98, %p99
      %p101 = scmp.ne.s32.totalorder %s93, %s95
      %p102 = scmp.eq.s32.totalorder %s22, 1
      %p103 = por %p101, %p102
      %p104 = scmp.ne.s32.totalorder %s95, %s96
      %p105 = scmp.eq.s32.totalorder %s22, 0
      %p106 = por %p104, %p105
      %p107 = scmp.ne.s32.totalorder %s95, %s96
      %p108 = scmp.eq.s32.totalorder %s23, 1
      %p109 = por %p107, %p108
      %p111 = scmp.ne.s32.totalorder %s96, %s110
      %p112 = scmp.eq.s32.totalorder %s23, 0
      %p113 = por %p111, %p112
      %s115 = sadd.s32 %s114, 1
      %p118 = scmp.eq.s32.totalorder %s17, 1
      %p119 = scmp.ne.s32.totalorder %s114, %s116
      %p120 = scmp.eq.s32.totalorder %s17, 0
      %p121 = por %p119, %p120
      %p122 = scmp.ne.s32.totalorder %s114, %s116
      %p123 = scmp.eq.s32.totalorder %s22, 1
      %p124 = por %p122, %p123
      %p125 = scmp.ne.s32.totalorder %s116, %s117
      %p126 = scmp.eq.s32.totalorder %s22, 0
      %p127 = por %p125, %p126
      %p128 = scmp.ne.s32.totalorder %s116, %s117
      %p129 = scmp.eq.s32.totalorder %s23, 1
      %p130 = por %p128, %p129
      %p132 = scmp.ne.s32.totalorder %s117, %s131
      %p133 = scmp.eq.s32.totalorder %s23, 0
      %p134 = por %p132, %p133
      %s136 = sadd.s32 %s135, 1
      %p139 = scmp.eq.s32.totalorder %s17, 1
      %p140 = scmp.ne.s32.totalorder %s135, %s137
      %p141 = scmp.eq.s32.totalorder %s17, 0
      %p142 = por %p140, %p141
      %p143 = scmp.ne.s32.totalorder %s135, %s137
      %p144 = scmp.eq.s32.totalorder %s22, 1
      %p145 = por %p143, %p144
      %p146 = scmp.ne.s32.totalorder %s137, %s138
      %p147 = scmp.eq.s32.totalorder %s22, 0
      %p148 = por %p146, %p147
      %p149 = scmp.ne.s32.totalorder %s137, %s138
      %p150 = scmp.eq.s32.totalorder %s23, 1
      %p151 = por %p149, %p150
      %p153 = scmp.ne.s32.totalorder %s138, %s152
      %p154 = scmp.eq.s32.totalorder %s23, 0
      %p155 = por %p153, %p154
      %s157 = sadd.s32 %s156, 1
      %p160 = scmp.eq.s32.totalorder %s17, 1
      %p161 = scmp.ne.s32.totalorder %s156, %s158
      %p162 = scmp.eq.s32.totalorder %s17, 0
      %p163 = por %p161, %p162
      %p164 = scmp.ne.s32.totalorder %s156, %s158
      %p165 = scmp.eq.s32.totalorder %s22, 1
      %p166 = por %p164, %p165
      %p167 = scmp.ne.s32.totalorder %s158, %s159
      %p168 = scmp.eq.s32.totalorder %s22, 0
      %p169 = por %p167, %p168
      %p170 = scmp.ne.s32.totalorder %s158, %s159
      %p171 = scmp.eq.s32.totalorder %s23, 1
      %p172 = por %p170, %p171
      %p174 = scmp.ne.s32.totalorder %s159, %s173
      %p175 = scmp.eq.s32.totalorder %s23, 0
      %p176 = por %p174, %p175
      %s178 = sadd.s32 %s177, 1
      %p181 = scmp.eq.s32.totalorder %s17, 1
      %p182 = scmp.ne.s32.totalorder %s177, %s179
      %p183 = scmp.eq.s32.totalorder %s17, 0
      %p184 = por %p182, %p183
      %p185 = scmp.ne.s32.totalorder %s177, %s179
      %p186 = scmp.eq.s32.totalorder %s22, 1
      %p187 = por %p185, %p186
      %p188 = scmp.ne.s32.totalorder %s179, %s180
      %p189 = scmp.eq.s32.totalorder %s22, 0
      %p190 = por %p188, %p189
      %p191 = scmp.ne.s32.totalorder %s179, %s180
      %p192 = scmp.eq.s32.totalorder %s23, 1
      %p193 = por %p191, %p192
      %p195 = scmp.ne.s32.totalorder %s180, %s194
      %p196 = scmp.eq.s32.totalorder %s23, 0
      %p197 = por %p195, %p196
      %s199 = sadd.s32 %s198, 1
      %p202 = scmp.eq.s32.totalorder %s17, 1
      %p203 = scmp.ne.s32.totalorder %s198, %s200
      %p204 = scmp.eq.s32.totalorder %s17, 0
      %p205 = por %p203, %p204
      %p206 = scmp.ne.s32.totalorder %s198, %s200
      %p207 = scmp.eq.s32.totalorder %s22, 1
      %p208 = por %p206, %p207
      %p209 = scmp.ne.s32.totalorder %s200, %s201
      %p210 = scmp.eq.s32.totalorder %s22, 0
      %p211 = por %p209, %p210
      %p212 = scmp.ne.s32.totalorder %s200, %s201
      %p213 = scmp.eq.s32.totalorder %s23, 1
      %p214 = por %p212, %p213
      %p216 = scmp.ne.s32.totalorder %s201, %s215
      %p217 = scmp.eq.s32.totalorder %s23, 0
      %p218 = por %p216, %p217
      %s219 = ssub.s32 %s17, %s24
      %p220 = scmp.eq.s32.totalorder %s219, 0
      %s222 = sadd.s32 %s221, 1
      %s223 = scalar_select %p220, %s221, %s222
      %p226 = pneg %p220
      %p227 = scmp.eq.s32.totalorder %s17, 1
      %p228 = por %p226, %p227
      %p229 = scmp.ne.s32.totalorder %s221, %s224
      %p230 = scmp.eq.s32.totalorder %s17, 0
      %p231 = por %p229, %p230
      %p232 = scmp.ne.s32.totalorder %s221, %s224
      %p233 = scmp.eq.s32.totalorder %s22, 1
      %p234 = por %p232, %p233
      %p235 = scmp.ne.s32.totalorder %s224, %s225
      %p236 = scmp.eq.s32.totalorder %s22, 0
      %p237 = por %p235, %p236
      %p238 = scmp.ne.s32.totalorder %s224, %s225
      %p239 = scmp.eq.s32.totalorder %s23, 1
      %p240 = por %p238, %p239
      %p242 = scmp.ne.s32.totalorder %s225, %s241
      %p243 = scmp.eq.s32.totalorder %s23, 0
      %p244 = por %p242, %p243
      %s245 = ssub.s32 %s17, %s24
      %p246 = scmp.eq.s32.totalorder %s245, 0
      %s248 = sadd.s32 %s247, 1
      %s249 = scalar_select %p246, %s247, %s248
      %p252 = pneg %p246
      %p253 = scmp.eq.s32.totalorder %s17, 1
      %p254 = por %p252, %p253
      %p255 = scmp.ne.s32.totalorder %s247, %s250
      %p256 = scmp.eq.s32.totalorder %s17, 0
      %p257 = por %p255, %p256
      %p258 = scmp.ne.s32.totalorder %s247, %s250
      %p259 = scmp.eq.s32.totalorder %s22, 1
      %p260 = por %p258, %p259
      %p261 = scmp.ne.s32.totalorder %s250, %s251
      %p262 = scmp.eq.s32.totalorder %s22, 0
      %p263 = por %p261, %p262
      %p264 = scmp.ne.s32.totalorder %s250, %s251
      %p265 = scmp.eq.s32.totalorder %s23, 1
      %p266 = por %p264, %p265
      %p268 = scmp.ne.s32.totalorder %s251, %s267
      %p269 = scmp.eq.s32.totalorder %s23, 0
      %p270 = por %p268, %p269
      %p271 = scmp.le.s32.totalorder 1, %s17
      %p272 = scmp.lt.s32.totalorder %s17, 3
      %p273 = pnand %p271, %p272
      %p274 = pneg %p273
      // Predicated region
      $region9: #{tpu_custom_call.1} parent=5 // pred_check
        _
      $region10: #{tpu_custom_call.1} parent=5 // pred_check_branch
        %276 = sbr.rel (%p273) target = $region12
      $region11: #{tpu_custom_call.1} parent=5 // pred_region
        %s277 = ssub.s32 %s17, 1
        // Predicated region
        $region13: #{tpu_custom_call.1} parent=11 // pred_check
          %p278 = pneg %p64
        $region14: #{tpu_custom_call.1} parent=11 // pred_check_branch
          %280 = sbr.rel (%p278) target = $region16
        $region15: #{tpu_custom_call.1} parent=11 // pred_region
          _
        $region16: #{tpu_custom_call.1} parent=11 // pred_fallthru
          _
        // Predicated region
        $region17: #{tpu_custom_call.1} parent=11 // pred_check
          %p281 = pneg %p85
        $region18: #{tpu_custom_call.1} parent=11 // pred_check_branch
          %283 = sbr.rel (%p281) target = $region20
        $region19: #{tpu_custom_call.1} parent=11 // pred_region
          _
        $region20: #{tpu_custom_call.1} parent=11 // pred_fallthru
          _
        // Predicated region
        $region21: #{tpu_custom_call.1} parent=11 // pred_check
          %p284 = pneg %p106
        $region22: #{tpu_custom_call.1} parent=11 // pred_check_branch
          %286 = sbr.rel (%p284) target = $region24
        $region23: #{tpu_custom_call.1} parent=11 // pred_region
          _
        $region24: #{tpu_custom_call.1} parent=11 // pred_fallthru
          _
        // Predicated region
        $region25: #{tpu_custom_call.1} parent=11 // pred_check
          %p287 = pneg %p127
        $region26: #{tpu_custom_call.1} parent=11 // pred_check_branch
          %289 = sbr.rel (%p287) target = $region28
        $region27: #{tpu_custom_call.1} parent=11 // pred_region
          _
        $region28: #{tpu_custom_call.1} parent=11 // pred_fallthru
          _
        // Predicated region
        $region29: #{tpu_custom_call.1} parent=11 // pred_check
          %p290 = pneg %p148
        $region30: #{tpu_custom_call.1} parent=11 // pred_check_branch
          %292 = sbr.rel (%p290) target = $region32
        $region31: #{tpu_custom_call.1} parent=11 // pred_region
          _
        $region32: #{tpu_custom_call.1} parent=11 // pred_fallthru
          _
        // Predicated region
        $region33: #{tpu_custom_call.1} parent=11 // pred_check
          %p293 = pneg %p169
        $region34: #{tpu_custom_call.1} parent=11 // pred_check_branch
          %295 = sbr.rel (%p293) target = $region36
        $region35: #{tpu_custom_call.1} parent=11 // pred_region
          _
        $region36: #{tpu_custom_call.1} parent=11 // pred_fallthru
          _
        // Predicated region
        $region37: #{tpu_custom_call.1} parent=11 // pred_check
          %p296 = pneg %p190
        $region38: #{tpu_custom_call.1} parent=11 // pred_check_branch
          %298 = sbr.rel (%p296) target = $region40
        $region39: #{tpu_custom_call.1} parent=11 // pred_region
          _
        $region40: #{tpu_custom_call.1} parent=11 // pred_fallthru
          _
        // Predicated region
        $region41: #{tpu_custom_call.1} parent=11 // pred_check
          %p299 = pneg %p211
        $region42: #{tpu_custom_call.1} parent=11 // pred_check_branch
          %301 = sbr.rel (%p299) target = $region44
        $region43: #{tpu_custom_call.1} parent=11 // pred_region
          _
        $region44: #{tpu_custom_call.1} parent=11 // pred_fallthru
          _
      $region12: #{tpu_custom_call.1} parent=5 // pred_fallthru
        _
      %p302 = scmp.lt.s32.totalorder %s17, 2
      // Predicated region
      $region45: #{tpu_custom_call.1} parent=5 // pred_check
        %p303 = pneg %p302
      $region46: #{tpu_custom_call.1} parent=5 // pred_check_branch
        %305 = sbr.rel (%p303) target = $region48
      $region47: #{tpu_custom_call.1} parent=5 // pred_region
        // Predicated region
        $region49: #{tpu_custom_call.1} parent=47 // pred_check
          %p306 = pneg %p37
        $region50: #{tpu_custom_call.1} parent=47 // pred_check_branch
          %308 = sbr.rel (%p306) target = $region52
        $region51: #{tpu_custom_call.1} parent=47 // pred_region
          %s309 = sand.u32 %s27, 1
          %s310 = sand.u32 %s27, 1
          %s311 = smul.addr %s310, 128
          %s312 = scalar_lea.vmem [#allocation2], %s311
          %s313 = smul.u32 4, %s17
          %s314 = smul.addr %s313, 4
          %s315 = scalar_lea.vmem %s0, %s314
          // Predicated region
          $region53: #{tpu_custom_call.1} parent=51 // pred_check
            _
          $region54: #{tpu_custom_call.1} parent=51 // pred_check_branch
            %317 = sbr.rel (0) target = $region56
          $region55: #{tpu_custom_call.1} parent=51 // pred_region
            // Predicated region
            $region57: #{tpu_custom_call.1} parent=55 // pred_check
              _
            $region58: #{tpu_custom_call.1} parent=55 // pred_check_branch
              %319 = sbr.rel target = $region60
            $region59: #{tpu_custom_call.1} parent=55 // pred_region
              // Predicated region
              $region72: #{tpu_custom_call.1} parent=59 // pred_check
                _
              $region73: #{tpu_custom_call.1} parent=59 // pred_check_branch
                %397 = sbr.rel (0) target = $region75
              $region74: #{tpu_custom_call.1} parent=59 // pred_region
                loop: start=0, step=1, limit=1
                $region76: #{tpu_custom_call.1} parent=74 // loop_pre_header
                  _
                $region77: #{tpu_custom_call.1} parent=74 // loop_header
                  %s399 = sphi 0, %s403
                  %p400 = scmp.ge.s32.totalorder %s399, 1
                  %s404 = sphi %s315, %s315
                  %s405 = sphi %s312, %s312
                $region78: #{tpu_custom_call.1} parent=74 // loop_header_branch
                  %402 = sbr.rel (%p400) target = $region82
                $region79: #{tpu_custom_call.1} parent=74 // loop_body
                  _
                $region80: #{tpu_custom_call.1} parent=74 // loop_footer
                  %s403 = sadd.s32 1, %s399
                $region81: #{tpu_custom_call.1} parent=74 // loop_footer_branch
                  %398 = sbr.rel target = $region77
                $region82: #{tpu_custom_call.1} parent=74 // loop_exit
                  _
                %s407 = ssub.s32 16, 1
                loop: start=0, step=1, limit=1
                $region83: #{tpu_custom_call.1} parent=74 // loop_pre_header
                  _
                $region84: #{tpu_custom_call.1} parent=74 // loop_header
                  %s409 = sphi 0, %s413
                  %p410 = scmp.ge.s32.totalorder %s409, 1
                  %s414 = sphi %s315, %s315
                  %s415 = sphi %s312, %s312
                $region85: #{tpu_custom_call.1} parent=74 // loop_header_branch
                  %412 = sbr.rel (%p410) target = $region89
                $region86: #{tpu_custom_call.1} parent=74 // loop_body
                  %v416 = vld [vmem:[%s414] sm:%s407]
                  %417 = vst [vmem:[%s415] sm:%s407] %v416
                  %v418 = vld [vmem:[%s414 + $0x4] sm:%s407]
                  %419 = vst [vmem:[%s415 + $0x4] sm:%s407] %v418
                  %v420 = vld [vmem:[%s414 + $0x8] sm:%s407]
                  %421 = vst [vmem:[%s415 + $0x8] sm:%s407] %v420
                  %v422 = vld [vmem:[%s414 + $0xc] sm:%s407]
                  %423 = vst [vmem:[%s415 + $0xc] sm:%s407] %v422
                  %v424 = vld [vmem:[%s414 + $0x20] sm:%s407]
                  %425 = vst [vmem:[%s415 + $0x10] sm:%s407] %v424
                  %v426 = vld [vmem:[%s414 + $0x24] sm:%s407]
                  %427 = vst [vmem:[%s415 + $0x14] sm:%s407] %v426
                  %v428 = vld [vmem:[%s414 + $0x28] sm:%s407]
                  %429 = vst [vmem:[%s415 + $0x18] sm:%s407] %v428
                  %v430 = vld [vmem:[%s414 + $0x2c] sm:%s407]
                  %431 = vst [vmem:[%s415 + $0x1c] sm:%s407] %v430
                  %v432 = vld [vmem:[%s414 + $0x40] sm:%s407]
                  %433 = vst [vmem:[%s415 + $0x20] sm:%s407] %v432
                  %v434 = vld [vmem:[%s414 + $0x44] sm:%s407]
                  %435 = vst [vmem:[%s415 + $0x24] sm:%s407] %v434
                  %v436 = vld [vmem:[%s414 + $0x48] sm:%s407]
                  %437 = vst [vmem:[%s415 + $0x28] sm:%s407] %v436
                  %v438 = vld [vmem:[%s414 + $0x4c] sm:%s407]
                  %439 = vst [vmem:[%s415 + $0x2c] sm:%s407] %v438
                  %v440 = vld [vmem:[%s414 + $0x60] sm:%s407]
                  %441 = vst [vmem:[%s415 + $0x30] sm:%s407] %v440
                  %v442 = vld [vmem:[%s414 + $0x64] sm:%s407]
                  %443 = vst [vmem:[%s415 + $0x34] sm:%s407] %v442
                  %v444 = vld [vmem:[%s414 + $0x68] sm:%s407]
                  %445 = vst [vmem:[%s415 + $0x38] sm:%s407] %v444
                  %v446 = vld [vmem:[%s414 + $0x6c] sm:%s407]
                  %447 = vst [vmem:[%s415 + $0x3c] sm:%s407] %v446
                  %v448 = vld [vmem:[%s414 + $0x80] sm:%s407]
                  %449 = vst [vmem:[%s415 + $0x40] sm:%s407] %v448
                  %v450 = vld [vmem:[%s414 + $0x84] sm:%s407]
                  %451 = vst [vmem:[%s415 + $0x44] sm:%s407] %v450
                  %v452 = vld [vmem:[%s414 + $0x88] sm:%s407]
                  %453 = vst [vmem:[%s415 + $0x48] sm:%s407] %v452
                  %v454 = vld [vmem:[%s414 + $0x8c] sm:%s407]
                  %455 = vst [vmem:[%s415 + $0x4c] sm:%s407] %v454
                  %v456 = vld [vmem:[%s414 + $0xa0] sm:%s407]
                  %457 = vst [vmem:[%s415 + $0x50] sm:%s407] %v456
                  %v458 = vld [vmem:[%s414 + $0xa4] sm:%s407]
                  %459 = vst [vmem:[%s415 + $0x54] sm:%s407] %v458
                  %v460 = vld [vmem:[%s414 + $0xa8] sm:%s407]
                  %461 = vst [vmem:[%s415 + $0x58] sm:%s407] %v460
                  %v462 = vld [vmem:[%s414 + $0xac] sm:%s407]
                  %463 = vst [vmem:[%s415 + $0x5c] sm:%s407] %v462
                  %v464 = vld [vmem:[%s414 + $0xc0] sm:%s407]
                  %465 = vst [vmem:[%s415 + $0x60] sm:%s407] %v464
                  %v466 = vld [vmem:[%s414 + $0xc4] sm:%s407]
                  %467 = vst [vmem:[%s415 + $0x64] sm:%s407] %v466
                  %v468 = vld [vmem:[%s414 + $0xc8] sm:%s407]
                  %469 = vst [vmem:[%s415 + $0x68] sm:%s407] %v468
                  %v470 = vld [vmem:[%s414 + $0xcc] sm:%s407]
                  %471 = vst [vmem:[%s415 + $0x6c] sm:%s407] %v470
                  %v472 = vld [vmem:[%s414 + $0xe0] sm:%s407]
                  %473 = vst [vmem:[%s415 + $0x70] sm:%s407] %v472
                  %v474 = vld [vmem:[%s414 + $0xe4] sm:%s407]
                  %475 = vst [vmem:[%s415 + $0x74] sm:%s407] %v474
                  %v476 = vld [vmem:[%s414 + $0xe8] sm:%s407]
                  %477 = vst [vmem:[%s415 + $0x78] sm:%s407] %v476
                  %v478 = vld [vmem:[%s414 + $0xec] sm:%s407]
                  %479 = vst [vmem:[%s415 + $0x7c] sm:%s407] %v478
                $region87: #{tpu_custom_call.1} parent=74 // loop_footer
                  %s413 = sadd.s32 1, %s409
                $region88: #{tpu_custom_call.1} parent=74 // loop_footer_branch
                  %408 = sbr.rel target = $region84
                $region89: #{tpu_custom_call.1} parent=74 // loop_exit
                  _
              $region75: #{tpu_custom_call.1} parent=59 // pred_fallthru
                _
            $region60: #{tpu_custom_call.1} parent=55 // pred_fallthru
              _
            // Predicated region
            $region61: #{tpu_custom_call.1} parent=55 // pred_check
              _
            $region62: #{tpu_custom_call.1} parent=55 // pred_check_branch
              %321 = sbr.rel (0) target = $region64
            $region63: #{tpu_custom_call.1} parent=55 // pred_region
              %s323 = ssub.s32 16, 1
              loop: start=0, step=1, limit=1
              $region65: #{tpu_custom_call.1} parent=63 // loop_pre_header
                _
              $region66: #{tpu_custom_call.1} parent=63 // loop_header
                %s325 = sphi 0, %s329
                %p326 = scmp.ge.s32.totalorder %s325, 1
                %s330 = sphi %s315, %s315
                %s331 = sphi %s312, %s312
              $region67: #{tpu_custom_call.1} parent=63 // loop_header_branch
                %328 = sbr.rel (%p326) target = $region71
              $region68: #{tpu_custom_call.1} parent=63 // loop_body
                %v332 = vld [vmem:[%s330] sm:%s323]
                %333 = vst [vmem:[%s331] sm:%s323] %v332
                %v334 = vld [vmem:[%s330 + $0x4] sm:%s323]
                %335 = vst [vmem:[%s331 + $0x4] sm:%s323] %v334
                %v336 = vld [vmem:[%s330 + $0x8] sm:%s323]
                %337 = vst [vmem:[%s331 + $0x8] sm:%s323] %v336
                %v338 = vld [vmem:[%s330 + $0xc] sm:%s323]
                %339 = vst [vmem:[%s331 + $0xc] sm:%s323] %v338
                %v340 = vld [vmem:[%s330 + $0x20] sm:%s323]
                %341 = vst [vmem:[%s331 + $0x10] sm:%s323] %v340
                %v342 = vld [vmem:[%s330 + $0x24] sm:%s323]
                %343 = vst [vmem:[%s331 + $0x14] sm:%s323] %v342
                %v344 = vld [vmem:[%s330 + $0x28] sm:%s323]
                %345 = vst [vmem:[%s331 + $0x18] sm:%s323] %v344
                %v346 = vld [vmem:[%s330 + $0x2c] sm:%s323]
                %347 = vst [vmem:[%s331 + $0x1c] sm:%s323] %v346
                %v348 = vld [vmem:[%s330 + $0x40] sm:%s323]
                %349 = vst [vmem:[%s331 + $0x20] sm:%s323] %v348
                %v350 = vld [vmem:[%s330 + $0x44] sm:%s323]
                %351 = vst [vmem:[%s331 + $0x24] sm:%s323] %v350
                %v352 = vld [vmem:[%s330 + $0x48] sm:%s323]
                %353 = vst [vmem:[%s331 + $0x28] sm:%s323] %v352
                %v354 = vld [vmem:[%s330 + $0x4c] sm:%s323]
                %355 = vst [vmem:[%s331 + $0x2c] sm:%s323] %v354
                %v356 = vld [vmem:[%s330 + $0x60] sm:%s323]
                %357 = vst [vmem:[%s331 + $0x30] sm:%s323] %v356
                %v358 = vld [vmem:[%s330 + $0x64] sm:%s323]
                %359 = vst [vmem:[%s331 + $0x34] sm:%s323] %v358
                %v360 = vld [vmem:[%s330 + $0x68] sm:%s323]
                %361 = vst [vmem:[%s331 + $0x38] sm:%s323] %v360
                %v362 = vld [vmem:[%s330 + $0x6c] sm:%s323]
                %363 = vst [vmem:[%s331 + $0x3c] sm:%s323] %v362
                %v364 = vld [vmem:[%s330 + $0x80] sm:%s323]
                %365 = vst [vmem:[%s331 + $0x40] sm:%s323] %v364
                %v366 = vld [vmem:[%s330 + $0x84] sm:%s323]
                %367 = vst [vmem:[%s331 + $0x44] sm:%s323] %v366
                %v368 = vld [vmem:[%s330 + $0x88] sm:%s323]
                %369 = vst [vmem:[%s331 + $0x48] sm:%s323] %v368
                %v370 = vld [vmem:[%s330 + $0x8c] sm:%s323]
                %371 = vst [vmem:[%s331 + $0x4c] sm:%s323] %v370
                %v372 = vld [vmem:[%s330 + $0xa0] sm:%s323]
                %373 = vst [vmem:[%s331 + $0x50] sm:%s323] %v372
                %v374 = vld [vmem:[%s330 + $0xa4] sm:%s323]
                %375 = vst [vmem:[%s331 + $0x54] sm:%s323] %v374
                %v376 = vld [vmem:[%s330 + $0xa8] sm:%s323]
                %377 = vst [vmem:[%s331 + $0x58] sm:%s323] %v376
                %v378 = vld [vmem:[%s330 + $0xac] sm:%s323]
                %379 = vst [vmem:[%s331 + $0x5c] sm:%s323] %v378
                %v380 = vld [vmem:[%s330 + $0xc0] sm:%s323]
                %381 = vst [vmem:[%s331 + $0x60] sm:%s323] %v380
                %v382 = vld [vmem:[%s330 + $0xc4] sm:%s323]
                %383 = vst [vmem:[%s331 + $0x64] sm:%s323] %v382
                %v384 = vld [vmem:[%s330 + $0xc8] sm:%s323]
                %385 = vst [vmem:[%s331 + $0x68] sm:%s323] %v384
                %v386 = vld [vmem:[%s330 + $0xcc] sm:%s323]
                %387 = vst [vmem:[%s331 + $0x6c] sm:%s323] %v386
                %v388 = vld [vmem:[%s330 + $0xe0] sm:%s323]
                %389 = vst [vmem:[%s331 + $0x70] sm:%s323] %v388
                %v390 = vld [vmem:[%s330 + $0xe4] sm:%s323]
                %391 = vst [vmem:[%s331 + $0x74] sm:%s323] %v390
                %v392 = vld [vmem:[%s330 + $0xe8] sm:%s323]
                %393 = vst [vmem:[%s331 + $0x78] sm:%s323] %v392
                %v394 = vld [vmem:[%s330 + $0xec] sm:%s323]
                %395 = vst [vmem:[%s331 + $0x7c] sm:%s323] %v394
              $region69: #{tpu_custom_call.1} parent=63 // loop_footer
                %s329 = sadd.s32 1, %s325
              $region70: #{tpu_custom_call.1} parent=63 // loop_footer_branch
                %324 = sbr.rel target = $region66
              $region71: #{tpu_custom_call.1} parent=63 // loop_exit
                _
            $region64: #{tpu_custom_call.1} parent=55 // pred_fallthru
              _
          $region56: #{tpu_custom_call.1} parent=51 // pred_fallthru
            _
          %480 = vnop
        $region52: #{tpu_custom_call.1} parent=47 // pred_fallthru
          _
      $region48: #{tpu_custom_call.1} parent=5 // pred_fallthru
        _
      %p481 = scmp.le.s32.totalorder 1, %s17
      %p482 = scmp.lt.s32.totalorder %s17, 3
      %p483 = pnand %p481, %p482
      %p484 = pneg %p483
      // Predicated region
      $region90: #{tpu_custom_call.1} parent=5 // pred_check
        _
      $region91: #{tpu_custom_call.1} parent=5 // pred_check_branch
        %486 = sbr.rel (%p483) target = $region93
      $region92: #{tpu_custom_call.1} parent=5 // pred_region
        %s487 = ssub.s32 %s17, 1
        %s488 = sand.u32 %s30, 1
        %s489 = sand.u32 %s30, 1
        %s490 = smul.addr %s489, 128
        %s491 = scalar_lea.vmem [#allocation2], %s490
        // Predicated region
        $region94: #{tpu_custom_call.1} parent=92 // pred_check
          %p492 = pneg %p43
        $region95: #{tpu_custom_call.1} parent=92 // pred_check_branch
          %494 = sbr.rel (%p492) target = $region97
        $region96: #{tpu_custom_call.1} parent=92 // pred_region
          _
        $region97: #{tpu_custom_call.1} parent=92 // pred_fallthru
          _
        %s495 = sand.u32 %s30, 1
        %s496 = sand.u32 %s30, 1
        %s497 = smul.addr %s496, 128
        %s498 = scalar_lea.vmem [#allocation2], %s497
        %p499 = pneg %p43
        %p500 = pneg %p40
        %p501 = pneg %p64
        %p502 = pneg %p61
        %p503 = pneg %p85
        %p504 = pneg %p82
        %p505 = pneg %p106
        %p506 = pneg %p103
        %p507 = pneg %p127
        %p508 = pneg %p124
        %p509 = pneg %p148
        %p510 = pneg %p145
        %p511 = pneg %p169
        %p512 = pneg %p166
        %p513 = pneg %p190
        %p514 = pneg %p187
        %p515 = pneg %p211
        %p516 = pneg %p208
        %p517 = pneg %p237
        %p518 = pneg %p234
        %s519 = smul.u32 4, %s22
        %p520 = scmp.lt.s32.totalorder %s519, 7
        %s521 = scalar_select %p520, %s519, 7
        %s522 = smul.addr %s521, 4
        %s523 = scalar_lea.vmem %s9, %s522
        %p524 = pneg %p263
        %p525 = pneg %p260
        %s526 = smul.u32 4, %s22
        %p527 = scmp.lt.s32.totalorder %s526, 7
        %s528 = scalar_select %p527, %s526, 7
        %s529 = smul.addr %s528, 8
        %s530 = scalar_lea.vmem %s10, %s529
        %s531 = smul.u32 4, %s22
        %s532 = smul.u32 4, %s22
        %p533 = scmp.lt.s32.totalorder %s532, 7
        %s534 = scalar_select %p533, %s532, 7
        %s535 = smul.addr %s534, 4
        %s536 = scalar_lea.vmem %s9, %s535
        %s537 = smul.u32 4, %s22
        %s538 = smul.u32 4, %s22
        %p539 = scmp.lt.s32.totalorder %s538, 7
        %s540 = scalar_select %p539, %s538, 7
        %s541 = smul.addr %s540, 8
        %s542 = scalar_lea.vmem %s10, %s541
        %s543 = smul.u32 4, %s22
        %v545 = vld [vmem:[%s491] sm:$0xf]
        %v546 = vld [vmem:[%s491 + $0x4] sm:$0xf]
        %v547 = vld [vmem:[%s491 + $0x8] sm:$0xf]
        %v548 = vld [vmem:[%s491 + $0xc] sm:$0xf]
        %v549 = vld [vmem:[%s491 + $0x10] sm:$0xf]
        %v550 = vld [vmem:[%s491 + $0x14] sm:$0xf]
        %v551 = vld [vmem:[%s491 + $0x18] sm:$0xf]
        %v552 = vld [vmem:[%s491 + $0x1c] sm:$0xf]
        %v553 = vld [vmem:[%s491 + $0x20] sm:$0xf]
        %v554 = vld [vmem:[%s491 + $0x24] sm:$0xf]
        %v555 = vld [vmem:[%s491 + $0x28] sm:$0xf]
        %v556 = vld [vmem:[%s491 + $0x2c] sm:$0xf]
        %v557 = vld [vmem:[%s491 + $0x30] sm:$0xf]
        %v558 = vld [vmem:[%s491 + $0x34] sm:$0xf]
        %v559 = vld [vmem:[%s491 + $0x38] sm:$0xf]
        %v560 = vld [vmem:[%s491 + $0x3c] sm:$0xf]
        %v561 = vld [vmem:[%s491 + $0x40] sm:$0xf]
        %v562 = vld [vmem:[%s491 + $0x44] sm:$0xf]
        %v563 = vld [vmem:[%s491 + $0x48] sm:$0xf]
        %v564 = vld [vmem:[%s491 + $0x4c] sm:$0xf]
        %v565 = vld [vmem:[%s491 + $0x50] sm:$0xf]
        %v566 = vld [vmem:[%s491 + $0x54] sm:$0xf]
        %v567 = vld [vmem:[%s491 + $0x58] sm:$0xf]
        %v568 = vld [vmem:[%s491 + $0x5c] sm:$0xf]
        %v569 = vld [vmem:[%s491 + $0x60] sm:$0xf]
        %v570 = vld [vmem:[%s491 + $0x64] sm:$0xf]
        %v571 = vld [vmem:[%s491 + $0x68] sm:$0xf]
        %v572 = vld [vmem:[%s491 + $0x6c] sm:$0xf]
        %v573 = vld [vmem:[%s491 + $0x70] sm:$0xf]
        %v574 = vld [vmem:[%s491 + $0x74] sm:$0xf]
        %v575 = vld [vmem:[%s491 + $0x78] sm:$0xf]
        %v576 = vld [vmem:[%s491 + $0x7c] sm:$0xf]
        %v577 = vld [vmem:[%s1] sm:$0xf]
        %v610 = vunpack.c.l.b16 %v545
        %v611 = vunpack.c.l.b16 %v546
        %v612 = vunpack.c.l.b16 %v547
        %v613 = vunpack.c.l.b16 %v548
        %v614 = vunpack.c.l.b16 %v549
        %v615 = vunpack.c.l.b16 %v550
        %v616 = vunpack.c.l.b16 %v551
        %v617 = vunpack.c.l.b16 %v552
        %v618 = vunpack.c.l.b16 %v553
        %v619 = vunpack.c.l.b16 %v554
        %v620 = vunpack.c.l.b16 %v555
        %v621 = vunpack.c.l.b16 %v556
        %v622 = vunpack.c.l.b16 %v557
        %v623 = vunpack.c.l.b16 %v558
        %v624 = vunpack.c.l.b16 %v559
        %v625 = vunpack.c.l.b16 %v560
        %v626 = vunpack.c.l.b16 %v561
        %v627 = vunpack.c.l.b16 %v562
        %v628 = vunpack.c.l.b16 %v563
        %v629 = vunpack.c.l.b16 %v564
        %v630 = vunpack.c.l.b16 %v565
        %v631 = vunpack.c.l.b16 %v566
        %v632 = vunpack.c.l.b16 %v567
        %v633 = vunpack.c.l.b16 %v568
        %v634 = vunpack.c.l.b16 %v569
        %v635 = vunpack.c.l.b16 %v570
        %v636 = vunpack.c.l.b16 %v571
        %v637 = vunpack.c.l.b16 %v572
        %v638 = vunpack.c.l.b16 %v573
        %v639 = vunpack.c.l.b16 %v574
        %v640 = vunpack.c.l.b16 %v575
        %v641 = vunpack.c.l.b16 %v576
        %v642 = vpack.c.b16 %v611, %v610
        %v643 = vpack.c.b16 %v613, %v612
        %v644 = vpack.c.b16 %v615, %v614
        %v645 = vpack.c.b16 %v617, %v616
        %v646 = vpack.c.b16 %v619, %v618
        %v647 = vpack.c.b16 %v621, %v620
        %v648 = vpack.c.b16 %v623, %v622
        %v649 = vpack.c.b16 %v625, %v624
        %v650 = vpack.c.b16 %v627, %v626
        %v651 = vpack.c.b16 %v629, %v628
        %v652 = vpack.c.b16 %v631, %v630
        %v653 = vpack.c.b16 %v633, %v632
        %v654 = vpack.c.b16 %v635, %v634
        %v655 = vpack.c.b16 %v637, %v636
        %v656 = vpack.c.b16 %v639, %v638
        %v657 = vpack.c.b16 %v641, %v640
        %vm658 = vcmask 56320
        %v660 = vsel %vm658, %v642, 0
        %v663 = vsel %vm658, %v643, 0
        %v666 = vsel %vm658, %v644, 0
        %v669 = vsel %vm658, %v645, 0
        %v672 = vsel %vm658, %v646, 0
        %v675 = vsel %vm658, %v647, 0
        %v678 = vsel %vm658, %v648, 0
        %v681 = vsel %vm658, %v649, 0
        %v684 = vsel %vm658, %v650, 0
        %v687 = vsel %vm658, %v651, 0
        %v690 = vsel %vm658, %v652, 0
        %v693 = vsel %vm658, %v653, 0
        %v696 = vsel %vm658, %v654, 0
        %v699 = vsel %vm658, %v655, 0
        %v702 = vsel %vm658, %v656, 0
        %v705 = vsel %vm658, %v657, 0
        %vm707 = vcmask 1042432
        %vm708 = vcmask 1043456
        %v709 = vsel %vm707, 4294967295, 65535
        %v710 = vsel %vm708, %v709, 0
        %v712 = vand.u32 %v577, %v710
        %714 = vmatprep.subr.bf16.mxu0 0
        %715 = vmatpush1.bf16.msra.mxu0 0
        %716 = vmatprep.subr.bf16.mxu0 0
        %717 = vmatpush1.bf16.msra.mxu0 0
        %718 = vmatprep.subr.bf16.mxu0 0
        %719 = vmatpush1.bf16.msra.mxu0 0
        %720 = vmatprep.subr.bf16.mxu0 0
        %721 = vmatpush1.bf16.msra.mxu0 0
        %722 = vmatprep.subr.bf16.mxu0 0
        %723 = vmatpush1.bf16.msra.mxu0 0
        %724 = vmatprep.subr.bf16.mxu0 0
        %725 = vmatpush1.bf16.msra.mxu0 0
        %726 = vmatprep.subr.bf16.mxu0 0
        %727 = vmatpush1.bf16.msra.mxu0 0
        %728 = vmatprep.subr.bf16.mxu0 0
        %729 = vmatpush1.bf16.msra.mxu0 %v712
        %730 = vmatprep.subr.bf16.mxu0 0
        %731 = vmatpush2.bf16.msra.mxu0 0
        %732 = vmatprep.subr.bf16.mxu0 0
        %733 = vmatpush2.bf16.msra.mxu0 0
        %734 = vmatprep.subr.bf16.mxu0 0
        %735 = vmatpush2.bf16.msra.mxu0 0
        %736 = vmatprep.subr.bf16.mxu0 0
        %737 = vmatpush2.bf16.msra.mxu0 0
        %738 = vmatprep.subr.bf16.mxu0 0
        %739 = vmatpush2.bf16.msra.mxu0 0
        %740 = vmatprep.subr.bf16.mxu0 0
        %741 = vmatpush2.bf16.msra.mxu0 0
        %742 = vmatprep.subr.bf16.mxu0 0
        %743 = vmatpush2.bf16.msra.mxu0 0
        %744 = vmatprep.subr.bf16.mxu0 0
        %745 = vmatpush2.bf16.msra.mxu0 0
        %746 = vmatprep.mubr.bf16.mxu0 0
        %747 = vmatmul.mubr.bf16.gmra.mxu0 %v660
        %v748 = vpop.f32.mrf.mxu0
        %v749 = vadd.f32 0.0, %v748
        %v750 = vpop.f32.mrf.mxu0
        %v751 = vpop.f32.mrf.mxu0
        %v752 = vadd.f32 0.0, %v751
        %v753 = vpop.f32.mrf.mxu0
        %754 = vmatprep.mubr.bf16.mxu0 0
        %755 = vmatmul.mubr.bf16.gmra.mxu0 %v663
        %v756 = vpop.f32.mrf.mxu0
        %v757 = vadd.f32 0.0, %v756
        %v758 = vpop.f32.mrf.mxu0
        %v759 = vpop.f32.mrf.mxu0
        %v760 = vadd.f32 0.0, %v759
        %v761 = vpop.f32.mrf.mxu0
        %762 = vmatprep.mubr.bf16.mxu0 0
        %763 = vmatmul.mubr.bf16.gmra.mxu0 %v666
        %v764 = vpop.f32.mrf.mxu0
        %v765 = vadd.f32 0.0, %v764
        %v766 = vpop.f32.mrf.mxu0
        %v767 = vpop.f32.mrf.mxu0
        %v768 = vadd.f32 0.0, %v767
        %v769 = vpop.f32.mrf.mxu0
        %770 = vmatprep.mubr.bf16.mxu0 0
        %771 = vmatmul.mubr.bf16.gmra.mxu0 %v669
        %v772 = vpop.f32.mrf.mxu0
        %v773 = vadd.f32 0.0, %v772
        %v774 = vpop.f32.mrf.mxu0
        %v775 = vpop.f32.mrf.mxu0
        %v776 = vadd.f32 0.0, %v775
        %v777 = vpop.f32.mrf.mxu0
        %778 = vmatprep.mubr.bf16.mxu0 0
        %779 = vmatmul.mubr.bf16.gmra.mxu0 %v672
        %v780 = vpop.f32.mrf.mxu0
        %v781 = vadd.f32 0.0, %v780
        %v782 = vpop.f32.mrf.mxu0
        %v783 = vpop.f32.mrf.mxu0
        %v784 = vadd.f32 0.0, %v783
        %v785 = vpop.f32.mrf.mxu0
        %786 = vmatprep.mubr.bf16.mxu0 0
        %787 = vmatmul.mubr.bf16.gmra.mxu0 %v675
        %v788 = vpop.f32.mrf.mxu0
        %v789 = vadd.f32 0.0, %v788
        %v790 = vpop.f32.mrf.mxu0
        %v791 = vpop.f32.mrf.mxu0
        %v792 = vadd.f32 0.0, %v791
        %v793 = vpop.f32.mrf.mxu0
        %794 = vmatprep.mubr.bf16.mxu0 0
        %795 = vmatmul.mubr.bf16.gmra.mxu0 %v678
        %v796 = vpop.f32.mrf.mxu0
        %v797 = vadd.f32 0.0, %v796
        %v798 = vpop.f32.mrf.mxu0
        %v799 = vpop.f32.mrf.mxu0
        %v800 = vadd.f32 0.0, %v799
        %v801 = vpop.f32.mrf.mxu0
        %802 = vmatprep.mubr.bf16.mxu0 0
        %803 = vmatmul.mubr.bf16.gmra.mxu0 %v681
        %v804 = vpop.f32.mrf.mxu0
        %v805 = vadd.f32 0.0, %v804
        %v806 = vpop.f32.mrf.mxu0
        %v807 = vpop.f32.mrf.mxu0
        %v808 = vadd.f32 0.0, %v807
        %v809 = vpop.f32.mrf.mxu0
        %810 = vmatprep.mubr.bf16.mxu0 0
        %811 = vmatmul.mubr.bf16.gmra.mxu0 %v684
        %v812 = vpop.f32.mrf.mxu0
        %v813 = vadd.f32 0.0, %v812
        %v814 = vpop.f32.mrf.mxu0
        %v815 = vpop.f32.mrf.mxu0
        %v816 = vadd.f32 0.0, %v815
        %v817 = vpop.f32.mrf.mxu0
        %818 = vmatprep.mubr.bf16.mxu0 0
        %819 = vmatmul.mubr.bf16.gmra.mxu0 %v687
        %v820 = vpop.f32.mrf.mxu0
        %v821 = vadd.f32 0.0, %v820
        %v822 = vpop.f32.mrf.mxu0
        %v823 = vpop.f32.mrf.mxu0
        %v824 = vadd.f32 0.0, %v823
        %v825 = vpop.f32.mrf.mxu0
        %826 = vmatprep.mubr.bf16.mxu0 0
        %827 = vmatmul.mubr.bf16.gmra.mxu0 %v690
        %v828 = vpop.f32.mrf.mxu0
        %v829 = vadd.f32 0.0, %v828
        %v830 = vpop.f32.mrf.mxu0
        %v831 = vpop.f32.mrf.mxu0
        %v832 = vadd.f32 0.0, %v831
        %v833 = vpop.f32.mrf.mxu0
        %834 = vmatprep.mubr.bf16.mxu0 0
        %835 = vmatmul.mubr.bf16.gmra.mxu0 %v693
        %v836 = vpop.f32.mrf.mxu0
        %v837 = vadd.f32 0.0, %v836
        %v838 = vpop.f32.mrf.mxu0
        %v839 = vpop.f32.mrf.mxu0
        %v840 = vadd.f32 0.0, %v839
        %v841 = vpop.f32.mrf.mxu0
        %842 = vmatprep.mubr.bf16.mxu0 0
        %843 = vmatmul.mubr.bf16.gmra.mxu0 %v696
        %v844 = vpop.f32.mrf.mxu0
        %v845 = vadd.f32 0.0, %v844
        %v846 = vpop.f32.mrf.mxu0
        %v847 = vpop.f32.mrf.mxu0
        %v848 = vadd.f32 0.0, %v847
        %v849 = vpop.f32.mrf.mxu0
        %850 = vmatprep.mubr.bf16.mxu0 0
        %851 = vmatmul.mubr.bf16.gmra.mxu0 %v699
        %v852 = vpop.f32.mrf.mxu0
        %v853 = vadd.f32 0.0, %v852
        %v854 = vpop.f32.mrf.mxu0
        %v855 = vpop.f32.mrf.mxu0
        %v856 = vadd.f32 0.0, %v855
        %v857 = vpop.f32.mrf.mxu0
        %858 = vmatprep.mubr.bf16.mxu0 0
        %859 = vmatmul.mubr.bf16.gmra.mxu0 %v702
        %v860 = vpop.f32.mrf.mxu0
        %v861 = vadd.f32 0.0, %v860
        %v862 = vpop.f32.mrf.mxu0
        %v863 = vpop.f32.mrf.mxu0
        %v864 = vadd.f32 0.0, %v863
        %v865 = vpop.f32.mrf.mxu0
        %866 = vmatprep.mubr.bf16.mxu0 0
        %867 = vmatmul.mubr.bf16.gmra.mxu0 %v705
        %v868 = vpop.f32.mrf.mxu0
        %v869 = vadd.f32 0.0, %v868
        %v870 = vpop.f32.mrf.mxu0
        %v871 = vpop.f32.mrf.mxu0
        %v872 = vadd.f32 0.0, %v871
        %v873 = vpop.f32.mrf.mxu0
        %874 = vdwg.mxu0
        %v875 = vld [vmem:[%s2] sm:$0x1]
        %v876 = vlaneseq
        %v877 = vshrl.u32 %v876, 7
        %v878 = vsub.s32 0, %v877
        %v879 = vrot.slane %v875, %v878
        %v880 = vmul.f32 %v749, %v879
        %v881 = vmul.f32 %v752, %v879
        %v882 = vmul.f32 %v757, %v879
        %v883 = vmul.f32 %v760, %v879
        %v884 = vmul.f32 %v765, %v879
        %v885 = vmul.f32 %v768, %v879
        %v886 = vmul.f32 %v773, %v879
        %v887 = vmul.f32 %v776, %v879
        %v888 = vmul.f32 %v781, %v879
        %v889 = vmul.f32 %v784, %v879
        %v890 = vmul.f32 %v789, %v879
        %v891 = vmul.f32 %v792, %v879
        %v892 = vmul.f32 %v797, %v879
        %v893 = vmul.f32 %v800, %v879
        %v894 = vmul.f32 %v805, %v879
        %v895 = vmul.f32 %v808, %v879
        %v896 = vmul.f32 %v813, %v879
        %v897 = vmul.f32 %v816, %v879
        %v898 = vmul.f32 %v821, %v879
        %v899 = vmul.f32 %v824, %v879
        %v900 = vmul.f32 %v829, %v879
        %v901 = vmul.f32 %v832, %v879
        %v902 = vmul.f32 %v837, %v879
        %v903 = vmul.f32 %v840, %v879
        %v904 = vmul.f32 %v845, %v879
        %v905 = vmul.f32 %v848, %v879
        %v906 = vmul.f32 %v853, %v879
        %v907 = vmul.f32 %v856, %v879
        %v908 = vmul.f32 %v861, %v879
        %v909 = vmul.f32 %v864, %v879
        %v910 = vmul.f32 %v869, %v879
        %v911 = vmul.f32 %v872, %v879
        %v912 = vld [vmem:[%s2 + $0x1] sm:$0x1]
        %v913 = vlaneseq
        %v914 = vshrl.u32 %v913, 7
        %v915 = vsub.s32 0, %v914
        %v916 = vrot.slane %v912, %v915
        %v917 = vadd.f32 %v880, %v916
        %v918 = vadd.f32 %v881, %v916
        %v919 = vadd.f32 %v882, %v916
        %v920 = vadd.f32 %v883, %v916
        %v921 = vadd.f32 %v884, %v916
        %v922 = vadd.f32 %v885, %v916
        %v923 = vadd.f32 %v886, %v916
        %v924 = vadd.f32 %v887, %v916
        %v925 = vadd.f32 %v888, %v916
        %v926 = vadd.f32 %v889, %v916
        %v927 = vadd.f32 %v890, %v916
        %v928 = vadd.f32 %v891, %v916
        %v929 = vadd.f32 %v892, %v916
        %v930 = vadd.f32 %v893, %v916
        %v931 = vadd.f32 %v894, %v916
        %v932 = vadd.f32 %v895, %v916
        %v933 = vadd.f32 %v896, %v916
        %v934 = vadd.f32 %v897, %v916
        %v935 = vadd.f32 %v898, %v916
        %v936 = vadd.f32 %v899, %v916
        %v937 = vadd.f32 %v900, %v916
        %v938 = vadd.f32 %v901, %v916
        %v939 = vadd.f32 %v902, %v916
        %v940 = vadd.f32 %v903, %v916
        %v941 = vadd.f32 %v904, %v916
        %v942 = vadd.f32 %v905, %v916
        %v943 = vadd.f32 %v906, %v916
        %v944 = vadd.f32 %v907, %v916
        %v945 = vadd.f32 %v908, %v916
        %v946 = vadd.f32 %v909, %v916
        %v947 = vadd.f32 %v910, %v916
        %v948 = vadd.f32 %v911, %v916
        %v949 = vmax.f32 %v917, 0.0
        %v950 = vmax.f32 %v918, 0.0
        %v951 = vmax.f32 %v919, 0.0
        %v952 = vmax.f32 %v920, 0.0
        %v953 = vmax.f32 %v921, 0.0
        %v954 = vmax.f32 %v922, 0.0
        %v955 = vmax.f32 %v923, 0.0
        %v956 = vmax.f32 %v924, 0.0
        %v957 = vmax.f32 %v925, 0.0
        %v958 = vmax.f32 %v926, 0.0
        %v959 = vmax.f32 %v927, 0.0
        %v960 = vmax.f32 %v928, 0.0
        %v961 = vmax.f32 %v929, 0.0
        %v962 = vmax.f32 %v930, 0.0
        %v963 = vmax.f32 %v931, 0.0
        %v964 = vmax.f32 %v932, 0.0
        %v965 = vmax.f32 %v933, 0.0
        %v966 = vmax.f32 %v934, 0.0
        %v967 = vmax.f32 %v935, 0.0
        %v968 = vmax.f32 %v936, 0.0
        %v969 = vmax.f32 %v937, 0.0
        %v970 = vmax.f32 %v938, 0.0
        %v971 = vmax.f32 %v939, 0.0
        %v972 = vmax.f32 %v940, 0.0
        %v973 = vmax.f32 %v941, 0.0
        %v974 = vmax.f32 %v942, 0.0
        %v975 = vmax.f32 %v943, 0.0
        %v976 = vmax.f32 %v944, 0.0
        %v977 = vmax.f32 %v945, 0.0
        %v978 = vmax.f32 %v946, 0.0
        %v979 = vmax.f32 %v947, 0.0
        %v980 = vmax.f32 %v948, 0.0
        %v981 = vmax.f32 %v949, %v953
        %v982 = vmax.f32 %v950, %v954
        %v983 = vmax.f32 %v951, %v955
        %v984 = vmax.f32 %v952, %v956
        %v985 = vmax.f32 %v981, %v957
        %v986 = vmax.f32 %v982, %v958
        %v987 = vmax.f32 %v983, %v959
        %v988 = vmax.f32 %v984, %v960
        %v989 = vmax.f32 %v985, %v961
        %v990 = vmax.f32 %v986, %v962
        %v991 = vmax.f32 %v987, %v963
        %v992 = vmax.f32 %v988, %v964
        %v993 = vmax.f32 %v989, %v965
        %v994 = vmax.f32 %v990, %v966
        %v995 = vmax.f32 %v991, %v967
        %v996 = vmax.f32 %v992, %v968
        %v997 = vmax.f32 %v993, %v969
        %v998 = vmax.f32 %v994, %v970
        %v999 = vmax.f32 %v995, %v971
        %v1000 = vmax.f32 %v996, %v972
        %v1001 = vmax.f32 %v997, %v973
        %v1002 = vmax.f32 %v998, %v974
        %v1003 = vmax.f32 %v999, %v975
        %v1004 = vmax.f32 %v1000, %v976
        %v1005 = vmax.f32 %v1001, %v977
        %v1006 = vmax.f32 %v1002, %v978
        %v1007 = vmax.f32 %v1003, %v979
        %v1008 = vmax.f32 %v1004, %v980
        %v1009 = vld [vmem:[%s4] sm:$0x3]
        %v1010 = vld [vmem:[%s6] sm:$0x3]
        %v1011 = vpack.c.bf16 %v1006, %v1005
        %v1012 = vpack.c.bf16 %v1008, %v1007
        %v1013 = vld [vmem:[%s3] sm:$0xf]
        %v1014 = vld [vmem:[%s3 + $0x4] sm:$0xf]
        %v1015 = vld [vmem:[%s3 + $0x8] sm:$0xf]
        %v1016 = vld [vmem:[%s3 + $0xc] sm:$0xf]
        %v1021 = vunpack.c.l.b16 %v1013
        %v1022 = vunpack.c.l.b16 %v1014
        %v1023 = vunpack.c.l.b16 %v1015
        %v1024 = vunpack.c.l.b16 %v1016
        %v1025 = vpack.c.b16 %v1022, %v1021
        %v1026 = vpack.c.b16 %v1024, %v1023
        %vm1029 = vcmask 261120
        %v1031 = vsel %vm1029, %v1011, 0
        %v1034 = vsel %vm1029, %v1012, 0
        %1036 = vmatprep.subr.bf16.mxu0 0
        %1037 = vmatpush1.bf16.msra.mxu0 0
        %1038 = vmatprep.subr.bf16.mxu0 0
        %1039 = vmatpush1.bf16.msra.mxu0 0
        %1040 = vmatprep.subr.bf16.mxu0 0
        %1041 = vmatpush1.bf16.msra.mxu0 0
        %1042 = vmatprep.subr.bf16.mxu0 0
        %1043 = vmatpush1.bf16.msra.mxu0 0
        %1044 = vmatprep.subr.bf16.mxu0 0
        %1045 = vmatpush1.bf16.msra.mxu0 0
        %1046 = vmatprep.subr.bf16.mxu0 0
        %1047 = vmatpush1.bf16.msra.mxu0 0
        %1048 = vmatprep.subr.bf16.mxu0 0
        %1049 = vmatpush1.bf16.msra.mxu0 %v1026
        %1050 = vmatprep.subr.bf16.mxu0 0
        %1051 = vmatpush1.bf16.msra.mxu0 %v1025
        %1052 = vmatprep.subr.bf16.mxu0 0
        %1053 = vmatpush2.bf16.msra.mxu0 0
        %1054 = vmatprep.subr.bf16.mxu0 0
        %1055 = vmatpush2.bf16.msra.mxu0 0
        %1056 = vmatprep.subr.bf16.mxu0 0
        %1057 = vmatpush2.bf16.msra.mxu0 0
        %1058 = vmatprep.subr.bf16.mxu0 0
        %1059 = vmatpush2.bf16.msra.mxu0 0
        %1060 = vmatprep.subr.bf16.mxu0 0
        %1061 = vmatpush2.bf16.msra.mxu0 0
        %1062 = vmatprep.subr.bf16.mxu0 0
        %1063 = vmatpush2.bf16.msra.mxu0 0
        %1064 = vmatprep.subr.bf16.mxu0 0
        %1065 = vmatpush2.bf16.msra.mxu0 0
        %1066 = vmatprep.subr.bf16.mxu0 0
        %1067 = vmatpush2.bf16.msra.mxu0 0
        %1068 = vmatprep.mubr.bf16.mxu0 0
        %1069 = vmatmul.mubr.bf16.gmra.mxu0 %v1031
        %v1070 = vpop.f32.mrf.mxu0
        %v1071 = vadd.f32 0.0, %v1070
        %v1072 = vpop.f32.mrf.mxu0
        %v1073 = vpop.f32.mrf.mxu0
        %v1074 = vadd.f32 0.0, %v1073
        %v1075 = vpop.f32.mrf.mxu0
        %1076 = vmatprep.mubr.bf16.mxu0 0
        %1077 = vmatmul.mubr.bf16.gmra.mxu0 %v1034
        %v1078 = vpop.f32.mrf.mxu0
        %v1079 = vadd.f32 0.0, %v1078
        %v1080 = vpop.f32.mrf.mxu0
        %v1081 = vpop.f32.mrf.mxu0
        %v1082 = vadd.f32 0.0, %v1081
        %v1083 = vpop.f32.mrf.mxu0
        %1084 = vdwg.mxu0
        %v1085 = vlaneseq
        %v1086 = vshrl.u32 %v1085, 7
        %v1087 = vsub.s32 0, %v1086
        %v1088 = vrot.slane %v1009, %v1087
        %v1089 = vmul.f32 %v1071, %v1088
        %v1090 = vmul.f32 %v1074, %v1088
        %v1091 = vmul.f32 %v1079, %v1088
        %v1092 = vmul.f32 %v1082, %v1088
        %v1093 = vlaneseq
        %v1094 = vshrl.u32 %v1093, 7
        %v1095 = vsub.s32 1, %v1094
        %v1096 = vrot.slane %v1009, %v1095
        %v1097 = vadd.f32 %v1089, %v1096
        %v1098 = vadd.f32 %v1090, %v1096
        %v1099 = vadd.f32 %v1091, %v1096
        %v1100 = vadd.f32 %v1092, %v1096
        %v1101 = vmax.f32 %v1097, 0.0
        %v1102 = vmax.f32 %v1098, 0.0
        %v1103 = vmax.f32 %v1099, 0.0
        %v1104 = vmax.f32 %v1100, 0.0
        %v1105 = vpack.c.bf16 %v1102, %v1101
        %v1106 = vpack.c.bf16 %v1104, %v1103
        %v1107 = vld [vmem:[%s5] sm:$0xf]
        %v1108 = vld [vmem:[%s5 + $0x4] sm:$0xf]
        %v1109 = vld [vmem:[%s5 + $0x8] sm:$0xf]
        %v1110 = vld [vmem:[%s5 + $0xc] sm:$0xf]
        %v1111 = vld [vmem:[%s5 + $0x10] sm:$0xf]
        %v1112 = vld [vmem:[%s5 + $0x14] sm:$0xf]
        %v1113 = vld [vmem:[%s5 + $0x18] sm:$0xf]
        %v1114 = vld [vmem:[%s5 + $0x1c] sm:$0xf]
        %v1123 = vunpack.c.l.b16 %v1107
        %v1124 = vunpack.c.l.b16 %v1108
        %v1125 = vunpack.c.l.b16 %v1109
        %v1126 = vunpack.c.l.b16 %v1110
        %v1127 = vunpack.c.l.b16 %v1111
        %v1128 = vunpack.c.l.b16 %v1112
        %v1129 = vunpack.c.l.b16 %v1113
        %v1130 = vunpack.c.l.b16 %v1114
        %v1131 = vpack.c.b16 %v1124, %v1123
        %v1132 = vpack.c.b16 %v1126, %v1125
        %v1133 = vpack.c.b16 %v1128, %v1127
        %v1134 = vpack.c.b16 %v1130, %v1129
        %vm1139 = vcmask 523264
        %v1141 = vsel %vm1139, %v1105, 0
        %v1144 = vsel %vm1139, %v1106, 0
        %1146 = vmatprep.subr.bf16.mxu0 0
        %1147 = vmatpush1.bf16.msra.mxu0 0
        %1148 = vmatprep.subr.bf16.mxu0 0
        %1149 = vmatpush1.bf16.msra.mxu0 0
        %1150 = vmatprep.subr.bf16.mxu0 0
        %1151 = vmatpush1.bf16.msra.mxu0 0
        %1152 = vmatprep.subr.bf16.mxu0 0
        %1153 = vmatpush1.bf16.msra.mxu0 0
        %1154 = vmatprep.subr.bf16.mxu0 0
        %1155 = vmatpush1.bf16.msra.mxu0 %v1134
        %1156 = vmatprep.subr.bf16.mxu0 0
        %1157 = vmatpush1.bf16.msra.mxu0 %v1133
        %1158 = vmatprep.subr.bf16.mxu0 0
        %1159 = vmatpush1.bf16.msra.mxu0 %v1132
        %1160 = vmatprep.subr.bf16.mxu0 0
        %1161 = vmatpush1.bf16.msra.mxu0 %v1131
        %1162 = vmatprep.subr.bf16.mxu0 0
        %1163 = vmatpush2.bf16.msra.mxu0 0
        %1164 = vmatprep.subr.bf16.mxu0 0
        %1165 = vmatpush2.bf16.msra.mxu0 0
        %1166 = vmatprep.subr.bf16.mxu0 0
        %1167 = vmatpush2.bf16.msra.mxu0 0
        %1168 = vmatprep.subr.bf16.mxu0 0
        %1169 = vmatpush2.bf16.msra.mxu0 0
        %1170 = vmatprep.subr.bf16.mxu0 0
        %1171 = vmatpush2.bf16.msra.mxu0 0
        %1172 = vmatprep.subr.bf16.mxu0 0
        %1173 = vmatpush2.bf16.msra.mxu0 0
        %1174 = vmatprep.subr.bf16.mxu0 0
        %1175 = vmatpush2.bf16.msra.mxu0 0
        %1176 = vmatprep.subr.bf16.mxu0 0
        %1177 = vmatpush2.bf16.msra.mxu0 0
        %1178 = vmatprep.mubr.bf16.mxu0 0
        %1179 = vmatmul.mubr.bf16.gmra.mxu0 %v1141
        %v1180 = vpop.f32.mrf.mxu0
        %v1181 = vadd.f32 0.0, %v1180
        %v1182 = vpop.f32.mrf.mxu0
        %v1183 = vpop.f32.mrf.mxu0
        %v1184 = vadd.f32 0.0, %v1183
        %v1185 = vpop.f32.mrf.mxu0
        %1186 = vmatprep.mubr.bf16.mxu0 0
        %1187 = vmatmul.mubr.bf16.gmra.mxu0 %v1144
        %v1188 = vpop.f32.mrf.mxu0
        %v1189 = vadd.f32 0.0, %v1188
        %v1190 = vpop.f32.mrf.mxu0
        %v1191 = vpop.f32.mrf.mxu0
        %v1192 = vadd.f32 0.0, %v1191
        %v1193 = vpop.f32.mrf.mxu0
        %1194 = vdwg.mxu0
        %v1195 = vlaneseq
        %v1196 = vshrl.u32 %v1195, 7
        %v1197 = vsub.s32 0, %v1196
        %v1198 = vrot.slane %v1010, %v1197
        %v1199 = vmul.f32 %v1181, %v1198
        %v1200 = vmul.f32 %v1184, %v1198
        %v1201 = vmul.f32 %v1189, %v1198
        %v1202 = vmul.f32 %v1192, %v1198
        %v1203 = vadd.f32 %v1005, %v1199
        %v1204 = vadd.f32 %v1006, %v1200
        %v1205 = vadd.f32 %v1007, %v1201
        %v1206 = vadd.f32 %v1008, %v1202
        %v1207 = vlaneseq
        %v1208 = vshrl.u32 %v1207, 7
        %v1209 = vsub.s32 1, %v1208
        %v1210 = vrot.slane %v1010, %v1209
        %v1211 = vadd.f32 %v1203, %v1210
        %v1212 = vadd.f32 %v1204, %v1210
        %v1213 = vadd.f32 %v1205, %v1210
        %v1214 = vadd.f32 %v1206, %v1210
        %s1215 = scalar_lea.vmem %s4, 2
        %v1216 = vld [vmem:[%s1215] sm:$0x3]
        %s1217 = scalar_lea.vmem %s6, 2
        %v1218 = vld [vmem:[%s1217] sm:$0x3]
        %v1219 = vpack.c.bf16 %v1212, %v1211
        %v1220 = vpack.c.bf16 %v1214, %v1213
        %s1221 = scalar_lea.vmem %s3, 16
        %v1222 = vld [vmem:[%s1221] sm:$0xf]
        %v1223 = vld [vmem:[%s1221 + $0x4] sm:$0xf]
        %v1224 = vld [vmem:[%s1221 + $0x8] sm:$0xf]
        %v1225 = vld [vmem:[%s1221 + $0xc] sm:$0xf]
        %v1230 = vunpack.c.l.b16 %v1222
        %v1231 = vunpack.c.l.b16 %v1223
        %v1232 = vunpack.c.l.b16 %v1224
        %v1233 = vunpack.c.l.b16 %v1225
        %v1234 = vpack.c.b16 %v1231, %v1230
        %v1235 = vpack.c.b16 %v1233, %v1232
        %v1239 = vsel %vm1029, %v1219, 0
        %v1242 = vsel %vm1029, %v1220, 0
        %1244 = vmatprep.subr.bf16.mxu0 0
        %1245 = vmatpush1.bf16.msra.mxu0 0
        %1246 = vmatprep.subr.bf16.mxu0 0
        %1247 = vmatpush1.bf16.msra.mxu0 0
        %1248 = vmatprep.subr.bf16.mxu0 0
        %1249 = vmatpush1.bf16.msra.mxu0 0
        %1250 = vmatprep.subr.bf16.mxu0 0
        %1251 = vmatpush1.bf16.msra.mxu0 0
        %1252 = vmatprep.subr.bf16.mxu0 0
        %1253 = vmatpush1.bf16.msra.mxu0 0
        %1254 = vmatprep.subr.bf16.mxu0 0
        %1255 = vmatpush1.bf16.msra.mxu0 0
        %1256 = vmatprep.subr.bf16.mxu0 0
        %1257 = vmatpush1.bf16.msra.mxu0 %v1235
        %1258 = vmatprep.subr.bf16.mxu0 0
        %1259 = vmatpush1.bf16.msra.mxu0 %v1234
        %1260 = vmatprep.subr.bf16.mxu0 0
        %1261 = vmatpush2.bf16.msra.mxu0 0
        %1262 = vmatprep.subr.bf16.mxu0 0
        %1263 = vmatpush2.bf16.msra.mxu0 0
        %1264 = vmatprep.subr.bf16.mxu0 0
        %1265 = vmatpush2.bf16.msra.mxu0 0
        %1266 = vmatprep.subr.bf16.mxu0 0
        %1267 = vmatpush2.bf16.msra.mxu0 0
        %1268 = vmatprep.subr.bf16.mxu0 0
        %1269 = vmatpush2.bf16.msra.mxu0 0
        %1270 = vmatprep.subr.bf16.mxu0 0
        %1271 = vmatpush2.bf16.msra.mxu0 0
        %1272 = vmatprep.subr.bf16.mxu0 0
        %1273 = vmatpush2.bf16.msra.mxu0 0
        %1274 = vmatprep.subr.bf16.mxu0 0
        %1275 = vmatpush2.bf16.msra.mxu0 0
        %1276 = vmatprep.mubr.bf16.mxu0 0
        %1277 = vmatmul.mubr.bf16.gmra.mxu0 %v1239
        %v1278 = vpop.f32.mrf.mxu0
        %v1279 = vadd.f32 0.0, %v1278
        %v1280 = vpop.f32.mrf.mxu0
        %v1281 = vpop.f32.mrf.mxu0
        %v1282 = vadd.f32 0.0, %v1281
        %v1283 = vpop.f32.mrf.mxu0
        %1284 = vmatprep.mubr.bf16.mxu0 0
        %1285 = vmatmul.mubr.bf16.gmra.mxu0 %v1242
        %v1286 = vpop.f32.mrf.mxu0
        %v1287 = vadd.f32 0.0, %v1286
        %v1288 = vpop.f32.mrf.mxu0
        %v1289 = vpop.f32.mrf.mxu0
        %v1290 = vadd.f32 0.0, %v1289
        %v1291 = vpop.f32.mrf.mxu0
        %1292 = vdwg.mxu0
        %v1293 = vlaneseq
        %v1294 = vshrl.u32 %v1293, 7
        %v1295 = vsub.s32 0, %v1294
        %v1296 = vrot.slane %v1216, %v1295
        %v1297 = vmul.f32 %v1279, %v1296
        %v1298 = vmul.f32 %v1282, %v1296
        %v1299 = vmul.f32 %v1287, %v1296
        %v1300 = vmul.f32 %v1290, %v1296
        %v1301 = vlaneseq
        %v1302 = vshrl.u32 %v1301, 7
        %v1303 = vsub.s32 1, %v1302
        %v1304 = vrot.slane %v1216, %v1303
        %v1305 = vadd.f32 %v1297, %v1304
        %v1306 = vadd.f32 %v1298, %v1304
        %v1307 = vadd.f32 %v1299, %v1304
        %v1308 = vadd.f32 %v1300, %v1304
        %v1309 = vmax.f32 %v1305, 0.0
        %v1310 = vmax.f32 %v1306, 0.0
        %v1311 = vmax.f32 %v1307, 0.0
        %v1312 = vmax.f32 %v1308, 0.0
        %v1313 = vpack.c.bf16 %v1310, %v1309
        %v1314 = vpack.c.bf16 %v1312, %v1311
        %s1315 = scalar_lea.vmem %s5, 32
        %v1316 = vld [vmem:[%s1315] sm:$0xf]
        %v1317 = vld [vmem:[%s1315 + $0x4] sm:$0xf]
        %v1318 = vld [vmem:[%s1315 + $0x8] sm:$0xf]
        %v1319 = vld [vmem:[%s1315 + $0xc] sm:$0xf]
        %v1320 = vld [vmem:[%s1315 + $0x10] sm:$0xf]
        %v1321 = vld [vmem:[%s1315 + $0x14] sm:$0xf]
        %v1322 = vld [vmem:[%s1315 + $0x18] sm:$0xf]
        %v1323 = vld [vmem:[%s1315 + $0x1c] sm:$0xf]
        %v1332 = vunpack.c.l.b16 %v1316
        %v1333 = vunpack.c.l.b16 %v1317
        %v1334 = vunpack.c.l.b16 %v1318
        %v1335 = vunpack.c.l.b16 %v1319
        %v1336 = vunpack.c.l.b16 %v1320
        %v1337 = vunpack.c.l.b16 %v1321
        %v1338 = vunpack.c.l.b16 %v1322
        %v1339 = vunpack.c.l.b16 %v1323
        %v1340 = vpack.c.b16 %v1333, %v1332
        %v1341 = vpack.c.b16 %v1335, %v1334
        %v1342 = vpack.c.b16 %v1337, %v1336
        %v1343 = vpack.c.b16 %v1339, %v1338
        %v1349 = vsel %vm1139, %v1313, 0
        %v1352 = vsel %vm1139, %v1314, 0
        %1354 = vmatprep.subr.bf16.mxu0 0
        %1355 = vmatpush1.bf16.msra.mxu0 0
        %1356 = vmatprep.subr.bf16.mxu0 0
        %1357 = vmatpush1.bf16.msra.mxu0 0
        %1358 = vmatprep.subr.bf16.mxu0 0
        %1359 = vmatpush1.bf16.msra.mxu0 0
        %1360 = vmatprep.subr.bf16.mxu0 0
        %1361 = vmatpush1.bf16.msra.mxu0 0
        %1362 = vmatprep.subr.bf16.mxu0 0
        %1363 = vmatpush1.bf16.msra.mxu0 %v1343
        %1364 = vmatprep.subr.bf16.mxu0 0
        %1365 = vmatpush1.bf16.msra.mxu0 %v1342
        %1366 = vmatprep.subr.bf16.mxu0 0
        %1367 = vmatpush1.bf16.msra.mxu0 %v1341
        %1368 = vmatprep.subr.bf16.mxu0 0
        %1369 = vmatpush1.bf16.msra.mxu0 %v1340
        %1370 = vmatprep.subr.bf16.mxu0 0
        %1371 = vmatpush2.bf16.msra.mxu0 0
        %1372 = vmatprep.subr.bf16.mxu0 0
        %1373 = vmatpush2.bf16.msra.mxu0 0
        %1374 = vmatprep.subr.bf16.mxu0 0
        %1375 = vmatpush2.bf16.msra.mxu0 0
        %1376 = vmatprep.subr.bf16.mxu0 0
        %1377 = vmatpush2.bf16.msra.mxu0 0
        %1378 = vmatprep.subr.bf16.mxu0 0
        %1379 = vmatpush2.bf16.msra.mxu0 0
        %1380 = vmatprep.subr.bf16.mxu0 0
        %1381 = vmatpush2.bf16.msra.mxu0 0
        %1382 = vmatprep.subr.bf16.mxu0 0
        %1383 = vmatpush2.bf16.msra.mxu0 0
        %1384 = vmatprep.subr.bf16.mxu0 0
        %1385 = vmatpush2.bf16.msra.mxu0 0
        %1386 = vmatprep.mubr.bf16.mxu0 0
        %1387 = vmatmul.mubr.bf16.gmra.mxu0 %v1349
        %v1388 = vpop.f32.mrf.mxu0
        %v1389 = vadd.f32 0.0, %v1388
        %v1390 = vpop.f32.mrf.mxu0
        %v1391 = vpop.f32.mrf.mxu0
        %v1392 = vadd.f32 0.0, %v1391
        %v1393 = vpop.f32.mrf.mxu0
        %1394 = vmatprep.mubr.bf16.mxu0 0
        %1395 = vmatmul.mubr.bf16.gmra.mxu0 %v1352
        %v1396 = vpop.f32.mrf.mxu0
        %v1397 = vadd.f32 0.0, %v1396
        %v1398 = vpop.f32.mrf.mxu0
        %v1399 = vpop.f32.mrf.mxu0
        %v1400 = vadd.f32 0.0, %v1399
        %v1401 = vpop.f32.mrf.mxu0
        %1402 = vdwg.mxu0
        %v1403 = vlaneseq
        %v1404 = vshrl.u32 %v1403, 7
        %v1405 = vsub.s32 0, %v1404
        %v1406 = vrot.slane %v1218, %v1405
        %v1407 = vmul.f32 %v1389, %v1406
        %v1408 = vmul.f32 %v1392, %v1406
        %v1409 = vmul.f32 %v1397, %v1406
        %v1410 = vmul.f32 %v1400, %v1406
        %v1411 = vadd.f32 %v1211, %v1407
        %v1412 = vadd.f32 %v1212, %v1408
        %v1413 = vadd.f32 %v1213, %v1409
        %v1414 = vadd.f32 %v1214, %v1410
        %v1415 = vlaneseq
        %v1416 = vshrl.u32 %v1415, 7
        %v1417 = vsub.s32 1, %v1416
        %v1418 = vrot.slane %v1218, %v1417
        %v1419 = vadd.f32 %v1411, %v1418
        %v1420 = vadd.f32 %v1412, %v1418
        %v1421 = vadd.f32 %v1413, %v1418
        %v1422 = vadd.f32 %v1414, %v1418
        %v1423 = vpack.c.bf16 %v1420, %v1419
        %v1424 = vpack.c.bf16 %v1422, %v1421
        %v1427 = vunpack.c.l.b16 %v1423
        %v1428 = vunpack.c.h.b16 %v1423
        %v1429 = vunpack.c.l.b16 %v1424
        %v1430 = vunpack.c.h.b16 %v1424
        %v1431 = vpack.c.b16 %v1427, %v1427
        %v1432 = vpack.c.b16 %v1428, %v1428
        %v1433 = vpack.c.b16 %v1429, %v1429
        %v1434 = vpack.c.b16 %v1430, %v1430
        %vm1439 = vcmask 257024
        %1440 = vst.msk [vmem:[%s536] sm:$0xf] %vm1439, %v1431
        %1441 = vst.msk [vmem:[%s536 + $0x4] sm:$0xf] %vm1439, %v1432
        %1442 = vst.msk [vmem:[%s536 + $0x8] sm:$0xf] %vm1439, %v1433
        %1443 = vst.msk [vmem:[%s536 + $0xc] sm:$0xf] %vm1439, %v1434
        %v1444 = vld [vmem:[%s7] sm:$0x1]
        %v1445 = vlaneseq
        %v1446 = vshrl.u32 %v1445, 7
        %v1447 = vsub.s32 0, %v1446
        %v1448 = vrot.slane %v1444, %v1447
        %v1449 = vmul.f32 %v1419, %v1448
        %v1450 = vmul.f32 %v1420, %v1448
        %v1451 = vmul.f32 %v1421, %v1448
        %v1452 = vmul.f32 %v1422, %v1448
        %v1453 = vld [vmem:[%s7 + $0x1] sm:$0x1]
        %v1454 = vlaneseq
        %v1455 = vshrl.u32 %v1454, 7
        %v1456 = vsub.s32 0, %v1455
        %v1457 = vrot.slane %v1453, %v1456
        %v1458 = vadd.f32 %v1449, %v1457
        %v1459 = vadd.f32 %v1450, %v1457
        %v1460 = vadd.f32 %v1451, %v1457
        %v1461 = vadd.f32 %v1452, %v1457
        %v1462 = vpack.c.bf16 %v1459, %v1458
        %v1463 = vpack.c.bf16 %v1461, %v1460
        %v1464 = vld [vmem:[%s8] sm:$0xf]
        %v1465 = vld [vmem:[%s8 + $0x4] sm:$0xf]
        %v1466 = vld [vmem:[%s8 + $0x8] sm:$0xf]
        %v1467 = vld [vmem:[%s8 + $0xc] sm:$0xf]
        %v1472 = vunpack.c.l.b16 %v1464
        %v1473 = vunpack.c.l.b16 %v1465
        %v1474 = vunpack.c.l.b16 %v1466
        %v1475 = vunpack.c.l.b16 %v1467
        %v1476 = vpack.c.b16 %v1473, %v1472
        %v1477 = vpack.c.b16 %v1475, %v1474
        %v1481 = vsel %vm1029, %v1462, 0
        %v1484 = vsel %vm1029, %v1463, 0
        %1486 = vmatprep.subr.bf16.mxu0 0
        %1487 = vmatpush1.bf16.msra.mxu0 0
        %1488 = vmatprep.subr.bf16.mxu0 0
        %1489 = vmatpush1.bf16.msra.mxu0 0
        %1490 = vmatprep.subr.bf16.mxu0 0
        %1491 = vmatpush1.bf16.msra.mxu0 0
        %1492 = vmatprep.subr.bf16.mxu0 0
        %1493 = vmatpush1.bf16.msra.mxu0 0
        %1494 = vmatprep.subr.bf16.mxu0 0
        %1495 = vmatpush1.bf16.msra.mxu0 0
        %1496 = vmatprep.subr.bf16.mxu0 0
        %1497 = vmatpush1.bf16.msra.mxu0 0
        %1498 = vmatprep.subr.bf16.mxu0 0
        %1499 = vmatpush1.bf16.msra.mxu0 %v1477
        %1500 = vmatprep.subr.bf16.mxu0 0
        %1501 = vmatpush1.bf16.msra.mxu0 %v1476
        %1502 = vmatprep.subr.bf16.mxu0 0
        %1503 = vmatpush2.bf16.msra.mxu0 0
        %1504 = vmatprep.subr.bf16.mxu0 0
        %1505 = vmatpush2.bf16.msra.mxu0 0
        %1506 = vmatprep.subr.bf16.mxu0 0
        %1507 = vmatpush2.bf16.msra.mxu0 0
        %1508 = vmatprep.subr.bf16.mxu0 0
        %1509 = vmatpush2.bf16.msra.mxu0 0
        %1510 = vmatprep.subr.bf16.mxu0 0
        %1511 = vmatpush2.bf16.msra.mxu0 0
        %1512 = vmatprep.subr.bf16.mxu0 0
        %1513 = vmatpush2.bf16.msra.mxu0 0
        %1514 = vmatprep.subr.bf16.mxu0 0
        %1515 = vmatpush2.bf16.msra.mxu0 0
        %1516 = vmatprep.subr.bf16.mxu0 0
        %1517 = vmatpush2.bf16.msra.mxu0 0
        %1518 = vmatprep.mubr.bf16.mxu0 0
        %1519 = vmatmul.mubr.bf16.gmra.mxu0 %v1481
        %v1520 = vpop.f32.mrf.mxu0
        %v1521 = vadd.f32 0.0, %v1520
        %v1522 = vpop.f32.mrf.mxu0
        %v1523 = vpop.f32.mrf.mxu0
        %v1524 = vadd.f32 0.0, %v1523
        %v1525 = vpop.f32.mrf.mxu0
        %1526 = vmatprep.mubr.bf16.mxu0 0
        %1527 = vmatmul.mubr.bf16.gmra.mxu0 %v1484
        %v1528 = vpop.f32.mrf.mxu0
        %v1529 = vadd.f32 0.0, %v1528
        %v1530 = vpop.f32.mrf.mxu0
        %v1531 = vpop.f32.mrf.mxu0
        %v1532 = vadd.f32 0.0, %v1531
        %v1533 = vpop.f32.mrf.mxu0
        %1534 = vdwg.mxu0
        %1535 = vst.msk [vmem:[%s542] sm:$0xff] %vm1029, %v1521
        %1536 = vst.msk [vmem:[%s542 + $0x8] sm:$0xff] %vm1029, %v1524
        %1537 = vst.msk [vmem:[%s542 + $0x10] sm:$0xff] %vm1029, %v1529
        %1538 = vst.msk [vmem:[%s542 + $0x18] sm:$0xff] %vm1029, %v1532
        %s1539 = smul.u32 4, %s22
        %p1540 = scmp.lt.s32.totalorder %s1539, 7
        %s1541 = scalar_select %p1540, %s1539, 7
        %s1542 = smul.addr %s1541, 4
        %s1543 = scalar_lea.vmem %s9, %s1542
        %s1544 = smul.u32 4, %s22
        %p1545 = scmp.lt.s32.totalorder %s1544, 7
        %s1546 = scalar_select %p1545, %s1544, 7
        %s1547 = smul.addr %s1546, 8
        %s1548 = scalar_lea.vmem %s10, %s1547
        // Predicated region
        $region98: #{tpu_custom_call.1} parent=92 // pred_check
          %p1549 = pneg %p234
        $region99: #{tpu_custom_call.1} parent=92 // pred_check_branch
          %1551 = sbr.rel (%p1549) target = $region101
        $region100: #{tpu_custom_call.1} parent=92 // pred_region
          %s1552 = smul.u32 4, %s22
        $region101: #{tpu_custom_call.1} parent=92 // pred_fallthru
          _
        // Predicated region
        $region102: #{tpu_custom_call.1} parent=92 // pred_check
          %p1553 = pneg %p260
        $region103: #{tpu_custom_call.1} parent=92 // pred_check_branch
          %1555 = sbr.rel (%p1553) target = $region105
        $region104: #{tpu_custom_call.1} parent=92 // pred_region
          %s1556 = smul.u32 4, %s22
        $region105: #{tpu_custom_call.1} parent=92 // pred_fallthru
          _
      $region93: #{tpu_custom_call.1} parent=5 // pred_fallthru
        _
      %p1557 = scmp.le.s32.totalorder 2, %s17
      // Predicated region
      $region106: #{tpu_custom_call.1} parent=5 // pred_check
        %p1558 = pneg %p1557
      $region107: #{tpu_custom_call.1} parent=5 // pred_check_branch
        %1560 = sbr.rel (%p1558) target = $region109
      $region108: #{tpu_custom_call.1} parent=5 // pred_region
        %s1561 = ssub.s32 %s17, 2
        // Predicated region
        $region110: #{tpu_custom_call.1} parent=108 // pred_check
          %p1562 = pneg %p240
        $region111: #{tpu_custom_call.1} parent=108 // pred_check_branch
          %1564 = sbr.rel (%p1562) target = $region113
        $region112: #{tpu_custom_call.1} parent=108 // pred_region
          %s1565 = smul.u32 4, %s23
          %p1566 = scmp.lt.s32.totalorder %s1565, 7
          %s1567 = scalar_select %p1566, %s1565, 7
          %s1568 = smul.addr %s1567, 4
          %s1569 = scalar_lea.vmem %s9, %s1568
        $region113: #{tpu_custom_call.1} parent=108 // pred_fallthru
          _
        // Predicated region
        $region114: #{tpu_custom_call.1} parent=108 // pred_check
          %p1570 = pneg %p266
        $region115: #{tpu_custom_call.1} parent=108 // pred_check_branch
          %1572 = sbr.rel (%p1570) target = $region117
        $region116: #{tpu_custom_call.1} parent=108 // pred_region
          %s1573 = smul.u32 4, %s23
          %p1574 = scmp.lt.s32.totalorder %s1573, 7
          %s1575 = scalar_select %p1574, %s1573, 7
          %s1576 = smul.addr %s1575, 8
          %s1577 = scalar_lea.vmem %s10, %s1576
        $region117: #{tpu_custom_call.1} parent=108 // pred_fallthru
          _
      $region109: #{tpu_custom_call.1} parent=5 // pred_fallthru
        _
    $region6: #{tpu_custom_call.1} parent=1 // loop_footer
      %s21 = sadd.s32 1, %s17
    $region7: #{tpu_custom_call.1} parent=1 // loop_footer_branch
      %16 = sbr.rel target = $region3
    $region8: #{tpu_custom_call.1} parent=1 // loop_exit
      _

</llo_original>
